<compile_context>
chip_gen: v7x
topology: tpu7x:2x2x1
jax: 0.10.0
libtpu: 0.0.40
codegen_flags: <defaults>
</compile_context>

<pallas_src>
import functools

import jax
import jax.numpy as jnp
from jax.experimental import pallas as pl


# ----------------------------- Pallas kernel --------------------------------

def _caa_kernel(x_ref, pmh_ref, pmv_ref, w1_ref, b1_ref, hwm_ref, vwm_ref,
                w2_ref, b2f_ref, o_ref, *, W, PK, HK, VK):
    f32 = jnp.float32
    S = x_ref.shape[-1]
    x = x_ref[...]                                               # (NC, S)

    def tap_sum(y, wm_ref, num_taps, lane_stride):
        """sum_j roll(y, -(j - mid)*stride) * wm_ref[j], wrap masked to zero.

        Two independent accumulator chains shorten the VALU critical path;
        the rolls only depend on y so they can all issue ahead of the adds.
        """
        mid = num_taps // 2
        terms = [y * wm_ref[mid]]
        for j in range(num_taps):
            d = j - mid
            if d == 0:
                continue
            shift = (-d * lane_stride) % S
            terms.append(jnp.roll(y, shift, axis=1) * wm_ref[j])
        acc0, acc1 = terms[0], terms[1]
        for t in range(2, len(terms), 2):
            acc0 = acc0 + terms[t]
        for t in range(3, len(terms), 2):
            acc1 = acc1 + terms[t]
        return acc0 + acc1

    # --- AvgPool2d(7, 1, 3), count_include_pad=True, as a separable masked
    #     box sum; the 1/49 scale is folded into w1. ---
    y = tap_sum(x, pmh_ref, PK, 1)      # horizontal window sum
    y = tap_sum(y, pmv_ref, PK, W)      # vertical window sum

    # --- conv1: 1x1 conv (+folded BN, +1/49) + SiLU, block-diag MXU matmul ---
    y = jnp.dot(w1_ref[...], y, preferred_element_type=f32) + b1_ref[...]
    y = y * jax.nn.sigmoid(y)

    # --- h_conv: depthwise (1, 11), zero pad (0, 5); bias folded into b2f ---
    y = tap_sum(y, hwm_ref, HK, 1)
    # --- v_conv: depthwise (11, 1), zero pad (5, 0); bias folded into b2f ---
    y = tap_sum(y, vwm_ref, VK, W)

    # --- conv2: 1x1 conv (+folded BN) + folded depthwise biases + SiLU ---
    y = jnp.dot(w2_ref[...], y, preferred_element_type=f32) + b2f_ref[...]
    y = y * jax.nn.sigmoid(y)

    # --- attention factor * input (lane-dense, unmasked full-tile store) ---
    o_ref[...] = (jax.nn.sigmoid(y) * x).astype(o_ref.dtype)


def caa_forward(x, pmh, pmv, w1_blk, b1_blk, hwm, vwm, w2_blk, b2_field):
    n, c, h, w = x.shape
    s = h * w
    nc = n * c
    x2 = x.reshape(nc, s)                                        # lane-dense

    kernel = functools.partial(_caa_kernel, W=w, PK=pmh.shape[0],
                               HK=hwm.shape[0], VK=vwm.shape[0])

    # Single invocation (no grid): all operands (<0.25 MB total) are resident
    # in VMEM as whole-array blocks.
    def full(a):
        return pl.BlockSpec(a.shape, lambda: (0,) * a.ndim)

    args = (x2, pmh, pmv, w1_blk, b1_blk, hwm, vwm, w2_blk, b2_field)
    out = pl.pallas_call(
        kernel,
        out_shape=jax.ShapeDtypeStruct((nc, s), x.dtype),
        in_specs=[full(a) for a in args],
        out_specs=pl.BlockSpec((nc, s), lambda: (0, 0)),
    )(*args)
    return out.reshape(n, c, h, w)


# ------------------------- glue: parameter helpers ---------------------------

def fold_bn(conv_w, gamma, beta, mean, var, eps=1e-5):
    scale = gamma / jnp.sqrt(var + eps)
    return conv_w * scale[:, None], beta - mean * scale


def boundary_masks(pos, extent, k):
    """(K, S) mask[j, s] = 1.0 iff 0 <= pos[s] + (j - k//2) < extent."""
    offs = (jnp.arange(k) - k // 2)[:, None]
    p = pos[None, :] + offs
    return ((p >= 0) & (p < extent)).astype(jnp.float32)


def tap_weight_masks(weights, pos, extent, n):
    """weights (C, K) depthwise taps -> (K, N*C, S) weight * boundary mask."""
    m = boundary_masks(pos, extent, weights.shape[1])            # (K, S)
    wm = weights.T[:, :, None] * m[:, None, :]                   # (K, C, S)
    return jnp.tile(wm, (1, n, 1))                               # (K, NC, S)


def block_diag(w, n):
    """kron(eye(N), w): per-sample 1x1 conv on the batch-stacked channels."""
    return jnp.kron(jnp.eye(n, dtype=w.dtype), w)


def conv2_bias_field(w2, b2, vw, hb, vb, row, h, n):
    """Fold h_conv/v_conv biases through v_conv + conv2 into a (N*C,S) field."""
    rmask = boundary_masks(row, h, vw.shape[1])                  # (K, S)
    vprop = (vw @ rmask) * hb[:, None]                           # v_conv(hb field)
    field = w2 @ (vprop + vb[:, None]) + b2[:, None]             # (C, S)
    return jnp.tile(field, (n, 1))                               # (NC, S)


# --------------------------- pure-JAX reference ------------------------------

def caa_reference(x, w1, b1, hw, hb, vw, vb, w2, b2):
    n, c, h, w = x.shape
    hk, vk = hw.shape[1], vw.shape[1]
    pooled = jax.lax.reduce_window(
        x, 0.0, jax.lax.add, (1, 1, 7, 7), (1, 1, 1, 1),
        [(0, 0), (0, 0), (3, 3), (3, 3)]) / 49.0
    y = jnp.einsum('oc,nchw->nohw', w1, pooled) + b1[None, :, None, None]
    y = y * jax.nn.sigmoid(y)
    y = jax.lax.conv_general_dilated(
        y, hw.reshape(c, 1, 1, hk), (1, 1), [(0, 0), (hk // 2, hk // 2)],
        dimension_numbers=('NCHW', 'OIHW', 'NCHW'),
        feature_group_count=c) + hb[None, :, None, None]
    y = jax.lax.conv_general_dilated(
        y, vw.reshape(c, 1, vk, 1), (1, 1), [(vk // 2, vk // 2), (0, 0)],
        dimension_numbers=('NCHW', 'OIHW', 'NCHW'),
        feature_group_count=c) + vb[None, :, None, None]
    y = jnp.einsum('oc,nchw->nohw', w2, y) + b2[None, :, None, None]
    y = y * jax.nn.sigmoid(y)
    return jax.nn.sigmoid(y) * x


# ----------------------------------- main ------------------------------------

if __name__ == "__main__":
    N, CH, H, W = 2, 4, 16, 16
    HK = VK = 11
    PK = 7
    S = H * W

    key = jax.random.PRNGKey(0)
    ks = jax.random.split(key, 16)
    f32 = jnp.float32

    conv1_w = 0.4 * jax.random.normal(ks[0], (CH, CH), f32)
    bn1_g = jax.random.uniform(ks[1], (CH,), f32, 0.8, 1.2)
    bn1_b = 0.1 * jax.random.normal(ks[2], (CH,), f32)
    bn1_m = 0.1 * jax.random.normal(ks[3], (CH,), f32)
    bn1_v = jax.random.uniform(ks[4], (CH,), f32, 0.5, 1.5)

    hw = 0.25 * jax.random.normal(ks[5], (CH, HK), f32)   # h_conv depthwise w
    hb = 0.1 * jax.random.normal(ks[6], (CH,), f32)       # h_conv bias
    vw = 0.25 * jax.random.normal(ks[7], (CH, VK), f32)   # v_conv depthwise w
    vb = 0.1 * jax.random.normal(ks[8], (CH,), f32)       # v_conv bias

    conv2_w = 0.4 * jax.random.normal(ks[9], (CH, CH), f32)
    bn2_g = jax.random.uniform(ks[10], (CH,), f32, 0.8, 1.2)
    bn2_b = 0.1 * jax.random.normal(ks[11], (CH,), f32)
    bn2_m = 0.1 * jax.random.normal(ks[12], (CH,), f32)
    bn2_v = jax.random.uniform(ks[13], (CH,), f32, 0.5, 1.5)

    x = jax.random.normal(ks[15], (N, CH, H, W), f32)

    # Fold BN (inference semantics) into the 1x1 conv weights/biases.
    w1_eff, b1_eff = fold_bn(conv1_w, bn1_g, bn1_b, bn1_m, bn1_v)
    w2_eff, b2_eff = fold_bn(conv2_w, bn2_g, bn2_b, bn2_m, bn2_v)

    row = jnp.arange(S) // W
    col = jnp.arange(S) % W

    # Kernel operands for the batch-stacked (N*C, S) layout.
    pmh = boundary_masks(col, W, PK)[:, None, :]             # (7, 1, S)
    pmv = boundary_masks(row, H, PK)[:, None, :]             # (7, 1, S)
    w1_blk = block_diag(w1_eff / float(PK * PK), N)          # (NC, NC), 1/49 folded
    b1_blk = jnp.tile(b1_eff[:, None], (N, 1))               # (NC, 1)
    hwm = tap_weight_masks(hw, col, W, N)                    # (11, NC, S)
    vwm = tap_weight_masks(vw, row, H, N)                    # (11, NC, S)
    w2_blk = block_diag(w2_eff, N)                           # (NC, NC)
    b2_field = conv2_bias_field(w2_eff, b2_eff, vw, hb, vb, row, H, N)  # (NC, S)

    out = caa_forward(x, pmh, pmv, w1_blk, b1_blk, hwm, vwm, w2_blk, b2_field)
    jax.block_until_ready(out)

    ref = caa_reference(x, w1_eff, b1_eff, hw, hb, vw, vb, w2_eff, b2_eff)
    err = float(jnp.max(jnp.abs(out - ref)))
    assert err < 1e-4, f"max abs err {err}"
    print("KERNEL_OK")
</pallas_src>

<mosaic_0001>
module attributes {stable_mosaic.version = 11 : i64} {
  func.func @_caa_kernel(%arg0: memref<8x256xf32, #tpu.memory_space<vmem>>, %arg1: memref<7x1x256xf32, #tpu.memory_space<vmem>>, %arg2: memref<7x1x256xf32, #tpu.memory_space<vmem>>, %arg3: memref<8x8xf32, #tpu.memory_space<vmem>>, %arg4: memref<8x1xf32, #tpu.memory_space<vmem>>, %arg5: memref<11x8x256xf32, #tpu.memory_space<vmem>>, %arg6: memref<11x8x256xf32, #tpu.memory_space<vmem>>, %arg7: memref<8x8xf32, #tpu.memory_space<vmem>>, %arg8: memref<8x256xf32, #tpu.memory_space<vmem>>, %arg9: memref<8x256xf32, #tpu.memory_space<vmem>>) attributes {dimension_semantics = [], scalar_prefetch = 0 : i64, scratch_operands = 0 : i64, tpu.core_type = #tpu.core_type<tc>} {
    %c0 = arith.constant 0 : index
    %c0_0 = arith.constant 0 : index
    %0 = vector.load %arg0[%c0, %c0_0] : memref<8x256xf32, #tpu.memory_space<vmem>>, vector<8x256xf32>
    %c3 = arith.constant 3 : index
    %c0_1 = arith.constant 0 : index
    %c0_2 = arith.constant 0 : index
    %1 = vector.load %arg1[%c3, %c0_1, %c0_2] : memref<7x1x256xf32, #tpu.memory_space<vmem>>, vector<1x1x256xf32>
    %2 = vector.shape_cast %1 : vector<1x1x256xf32> to vector<1x256xf32>
    %3 = vector.broadcast %2 : vector<1x256xf32> to vector<8x256xf32>
    %4 = arith.mulf %0, %3 : vector<8x256xf32>
    %5 = vector.extract_strided_slice %0 {offsets = [0, 253], sizes = [8, 3], strides = [1, 1]} : vector<8x256xf32> to vector<8x3xf32>
    %6 = vector.extract_strided_slice %0 {offsets = [0, 0], sizes = [8, 253], strides = [1, 1]} : vector<8x256xf32> to vector<8x253xf32>
    %7 = tpu.concatenate %5, %6 in 1 : vector<8x3xf32>, vector<8x253xf32> -> vector<8x256xf32>
    %c0_3 = arith.constant 0 : index
    %c0_4 = arith.constant 0 : index
    %c0_5 = arith.constant 0 : index
    %8 = vector.load %arg1[%c0_3, %c0_4, %c0_5] : memref<7x1x256xf32, #tpu.memory_space<vmem>>, vector<1x1x256xf32>
    %9 = vector.shape_cast %8 : vector<1x1x256xf32> to vector<1x256xf32>
    %10 = vector.broadcast %9 : vector<1x256xf32> to vector<8x256xf32>
    %11 = arith.mulf %7, %10 : vector<8x256xf32>
    %12 = vector.extract_strided_slice %0 {offsets = [0, 254], sizes = [8, 2], strides = [1, 1]} : vector<8x256xf32> to vector<8x2xf32>
    %13 = vector.extract_strided_slice %0 {offsets = [0, 0], sizes = [8, 254], strides = [1, 1]} : vector<8x256xf32> to vector<8x254xf32>
    %14 = tpu.concatenate %12, %13 in 1 : vector<8x2xf32>, vector<8x254xf32> -> vector<8x256xf32>
    %c1 = arith.constant 1 : index
    %c0_6 = arith.constant 0 : index
    %c0_7 = arith.constant 0 : index
    %15 = vector.load %arg1[%c1, %c0_6, %c0_7] : memref<7x1x256xf32, #tpu.memory_space<vmem>>, vector<1x1x256xf32>
    %16 = vector.shape_cast %15 : vector<1x1x256xf32> to vector<1x256xf32>
    %17 = vector.broadcast %16 : vector<1x256xf32> to vector<8x256xf32>
    %18 = arith.mulf %14, %17 : vector<8x256xf32>
    %19 = vector.extract_strided_slice %0 {offsets = [0, 255], sizes = [8, 1], strides = [1, 1]} : vector<8x256xf32> to vector<8x1xf32>
    %20 = vector.extract_strided_slice %0 {offsets = [0, 0], sizes = [8, 255], strides = [1, 1]} : vector<8x256xf32> to vector<8x255xf32>
    %21 = tpu.concatenate %19, %20 in 1 : vector<8x1xf32>, vector<8x255xf32> -> vector<8x256xf32>
    %c2 = arith.constant 2 : index
    %c0_8 = arith.constant 0 : index
    %c0_9 = arith.constant 0 : index
    %22 = vector.load %arg1[%c2, %c0_8, %c0_9] : memref<7x1x256xf32, #tpu.memory_space<vmem>>, vector<1x1x256xf32>
    %23 = vector.shape_cast %22 : vector<1x1x256xf32> to vector<1x256xf32>
    %24 = vector.broadcast %23 : vector<1x256xf32> to vector<8x256xf32>
    %25 = arith.mulf %21, %24 : vector<8x256xf32>
    %26 = vector.extract_strided_slice %0 {offsets = [0, 1], sizes = [8, 255], strides = [1, 1]} : vector<8x256xf32> to vector<8x255xf32>
    %27 = vector.extract_strided_slice %0 {offsets = [0, 0], sizes = [8, 1], strides = [1, 1]} : vector<8x256xf32> to vector<8x1xf32>
    %28 = tpu.concatenate %26, %27 in 1 : vector<8x255xf32>, vector<8x1xf32> -> vector<8x256xf32>
    %c4 = arith.constant 4 : index
    %c0_10 = arith.constant 0 : index
    %c0_11 = arith.constant 0 : index
    %29 = vector.load %arg1[%c4, %c0_10, %c0_11] : memref<7x1x256xf32, #tpu.memory_space<vmem>>, vector<1x1x256xf32>
    %30 = vector.shape_cast %29 : vector<1x1x256xf32> to vector<1x256xf32>
    %31 = vector.broadcast %30 : vector<1x256xf32> to vector<8x256xf32>
    %32 = arith.mulf %28, %31 : vector<8x256xf32>
    %33 = vector.extract_strided_slice %0 {offsets = [0, 2], sizes = [8, 254], strides = [1, 1]} : vector<8x256xf32> to vector<8x254xf32>
    %34 = vector.extract_strided_slice %0 {offsets = [0, 0], sizes = [8, 2], strides = [1, 1]} : vector<8x256xf32> to vector<8x2xf32>
    %35 = tpu.concatenate %33, %34 in 1 : vector<8x254xf32>, vector<8x2xf32> -> vector<8x256xf32>
    %c5 = arith.constant 5 : index
    %c0_12 = arith.constant 0 : index
    %c0_13 = arith.constant 0 : index
    %36 = vector.load %arg1[%c5, %c0_12, %c0_13] : memref<7x1x256xf32, #tpu.memory_space<vmem>>, vector<1x1x256xf32>
    %37 = vector.shape_cast %36 : vector<1x1x256xf32> to vector<1x256xf32>
    %38 = vector.broadcast %37 : vector<1x256xf32> to vector<8x256xf32>
    %39 = arith.mulf %35, %38 : vector<8x256xf32>
    %40 = vector.extract_strided_slice %0 {offsets = [0, 3], sizes = [8, 253], strides = [1, 1]} : vector<8x256xf32> to vector<8x253xf32>
    %41 = vector.extract_strided_slice %0 {offsets = [0, 0], sizes = [8, 3], strides = [1, 1]} : vector<8x256xf32> to vector<8x3xf32>
    %42 = tpu.concatenate %40, %41 in 1 : vector<8x253xf32>, vector<8x3xf32> -> vector<8x256xf32>
    %c6 = arith.constant 6 : index
    %c0_14 = arith.constant 0 : index
    %c0_15 = arith.constant 0 : index
    %43 = vector.load %arg1[%c6, %c0_14, %c0_15] : memref<7x1x256xf32, #tpu.memory_space<vmem>>, vector<1x1x256xf32>
    %44 = vector.shape_cast %43 : vector<1x1x256xf32> to vector<1x256xf32>
    %45 = vector.broadcast %44 : vector<1x256xf32> to vector<8x256xf32>
    %46 = arith.mulf %42, %45 : vector<8x256xf32>
    %47 = arith.addf %4, %18 : vector<8x256xf32>
    %48 = arith.addf %47, %32 : vector<8x256xf32>
    %49 = arith.addf %48, %46 : vector<8x256xf32>
    %50 = arith.addf %11, %25 : vector<8x256xf32>
    %51 = arith.addf %50, %39 : vector<8x256xf32>
    %52 = arith.addf %49, %51 : vector<8x256xf32>
    %c3_16 = arith.constant 3 : index
    %c0_17 = arith.constant 0 : index
    %c0_18 = arith.constant 0 : index
    %53 = vector.load %arg2[%c3_16, %c0_17, %c0_18] : memref<7x1x256xf32, #tpu.memory_space<vmem>>, vector<1x1x256xf32>
    %54 = vector.shape_cast %53 : vector<1x1x256xf32> to vector<1x256xf32>
    %55 = vector.broadcast %54 : vector<1x256xf32> to vector<8x256xf32>
    %56 = arith.mulf %52, %55 : vector<8x256xf32>
    %57 = vector.extract_strided_slice %52 {offsets = [0, 208], sizes = [8, 48], strides = [1, 1]} : vector<8x256xf32> to vector<8x48xf32>
    %58 = vector.extract_strided_slice %52 {offsets = [0, 0], sizes = [8, 208], strides = [1, 1]} : vector<8x256xf32> to vector<8x208xf32>
    %59 = tpu.concatenate %57, %58 in 1 : vector<8x48xf32>, vector<8x208xf32> -> vector<8x256xf32>
    %c0_19 = arith.constant 0 : index
    %c0_20 = arith.constant 0 : index
    %c0_21 = arith.constant 0 : index
    %60 = vector.load %arg2[%c0_19, %c0_20, %c0_21] : memref<7x1x256xf32, #tpu.memory_space<vmem>>, vector<1x1x256xf32>
    %61 = vector.shape_cast %60 : vector<1x1x256xf32> to vector<1x256xf32>
    %62 = vector.broadcast %61 : vector<1x256xf32> to vector<8x256xf32>
    %63 = arith.mulf %59, %62 : vector<8x256xf32>
    %64 = vector.extract_strided_slice %52 {offsets = [0, 224], sizes = [8, 32], strides = [1, 1]} : vector<8x256xf32> to vector<8x32xf32>
    %65 = vector.extract_strided_slice %52 {offsets = [0, 0], sizes = [8, 224], strides = [1, 1]} : vector<8x256xf32> to vector<8x224xf32>
    %66 = tpu.concatenate %64, %65 in 1 : vector<8x32xf32>, vector<8x224xf32> -> vector<8x256xf32>
    %c1_22 = arith.constant 1 : index
    %c0_23 = arith.constant 0 : index
    %c0_24 = arith.constant 0 : index
    %67 = vector.load %arg2[%c1_22, %c0_23, %c0_24] : memref<7x1x256xf32, #tpu.memory_space<vmem>>, vector<1x1x256xf32>
    %68 = vector.shape_cast %67 : vector<1x1x256xf32> to vector<1x256xf32>
    %69 = vector.broadcast %68 : vector<1x256xf32> to vector<8x256xf32>
    %70 = arith.mulf %66, %69 : vector<8x256xf32>
    %71 = vector.extract_strided_slice %52 {offsets = [0, 240], sizes = [8, 16], strides = [1, 1]} : vector<8x256xf32> to vector<8x16xf32>
    %72 = vector.extract_strided_slice %52 {offsets = [0, 0], sizes = [8, 240], strides = [1, 1]} : vector<8x256xf32> to vector<8x240xf32>
    %73 = tpu.concatenate %71, %72 in 1 : vector<8x16xf32>, vector<8x240xf32> -> vector<8x256xf32>
    %c2_25 = arith.constant 2 : index
    %c0_26 = arith.constant 0 : index
    %c0_27 = arith.constant 0 : index
    %74 = vector.load %arg2[%c2_25, %c0_26, %c0_27] : memref<7x1x256xf32, #tpu.memory_space<vmem>>, vector<1x1x256xf32>
    %75 = vector.shape_cast %74 : vector<1x1x256xf32> to vector<1x256xf32>
    %76 = vector.broadcast %75 : vector<1x256xf32> to vector<8x256xf32>
    %77 = arith.mulf %73, %76 : vector<8x256xf32>
    %78 = vector.extract_strided_slice %52 {offsets = [0, 16], sizes = [8, 240], strides = [1, 1]} : vector<8x256xf32> to vector<8x240xf32>
    %79 = vector.extract_strided_slice %52 {offsets = [0, 0], sizes = [8, 16], strides = [1, 1]} : vector<8x256xf32> to vector<8x16xf32>
    %80 = tpu.concatenate %78, %79 in 1 : vector<8x240xf32>, vector<8x16xf32> -> vector<8x256xf32>
    %c4_28 = arith.constant 4 : index
    %c0_29 = arith.constant 0 : index
    %c0_30 = arith.constant 0 : index
    %81 = vector.load %arg2[%c4_28, %c0_29, %c0_30] : memref<7x1x256xf32, #tpu.memory_space<vmem>>, vector<1x1x256xf32>
    %82 = vector.shape_cast %81 : vector<1x1x256xf32> to vector<1x256xf32>
    %83 = vector.broadcast %82 : vector<1x256xf32> to vector<8x256xf32>
    %84 = arith.mulf %80, %83 : vector<8x256xf32>
    %85 = vector.extract_strided_slice %52 {offsets = [0, 32], sizes = [8, 224], strides = [1, 1]} : vector<8x256xf32> to vector<8x224xf32>
    %86 = vector.extract_strided_slice %52 {offsets = [0, 0], sizes = [8, 32], strides = [1, 1]} : vector<8x256xf32> to vector<8x32xf32>
    %87 = tpu.concatenate %85, %86 in 1 : vector<8x224xf32>, vector<8x32xf32> -> vector<8x256xf32>
    %c5_31 = arith.constant 5 : index
    %c0_32 = arith.constant 0 : index
    %c0_33 = arith.constant 0 : index
    %88 = vector.load %arg2[%c5_31, %c0_32, %c0_33] : memref<7x1x256xf32, #tpu.memory_space<vmem>>, vector<1x1x256xf32>
    %89 = vector.shape_cast %88 : vector<1x1x256xf32> to vector<1x256xf32>
    %90 = vector.broadcast %89 : vector<1x256xf32> to vector<8x256xf32>
    %91 = arith.mulf %87, %90 : vector<8x256xf32>
    %92 = vector.extract_strided_slice %52 {offsets = [0, 48], sizes = [8, 208], strides = [1, 1]} : vector<8x256xf32> to vector<8x208xf32>
    %93 = vector.extract_strided_slice %52 {offsets = [0, 0], sizes = [8, 48], strides = [1, 1]} : vector<8x256xf32> to vector<8x48xf32>
    %94 = tpu.concatenate %92, %93 in 1 : vector<8x208xf32>, vector<8x48xf32> -> vector<8x256xf32>
    %c6_34 = arith.constant 6 : index
    %c0_35 = arith.constant 0 : index
    %c0_36 = arith.constant 0 : index
    %95 = vector.load %arg2[%c6_34, %c0_35, %c0_36] : memref<7x1x256xf32, #tpu.memory_space<vmem>>, vector<1x1x256xf32>
    %96 = vector.shape_cast %95 : vector<1x1x256xf32> to vector<1x256xf32>
    %97 = vector.broadcast %96 : vector<1x256xf32> to vector<8x256xf32>
    %98 = arith.mulf %94, %97 : vector<8x256xf32>
    %99 = arith.addf %56, %70 : vector<8x256xf32>
    %100 = arith.addf %99, %84 : vector<8x256xf32>
    %101 = arith.addf %100, %98 : vector<8x256xf32>
    %102 = arith.addf %63, %77 : vector<8x256xf32>
    %103 = arith.addf %102, %91 : vector<8x256xf32>
    %104 = arith.addf %101, %103 : vector<8x256xf32>
    %c0_37 = arith.constant 0 : index
    %c0_38 = arith.constant 0 : index
    %105 = vector.load %arg3[%c0_37, %c0_38] : memref<8x8xf32, #tpu.memory_space<vmem>>, vector<8x8xf32>
    %cst = arith.constant dense<0.000000e+00> : vector<8x256xf32>
    %106 = tpu.matmul %105, %104, %cst {dimension_numbers = #tpu.dot_dimension_numbers<[1], [0], [0], [1], [0, 0, 1, 1], [], []>} : vector<8x8xf32>, vector<8x256xf32>, vector<8x256xf32> -> vector<8x256xf32>
    %c0_39 = arith.constant 0 : index
    %c0_40 = arith.constant 0 : index
    %107 = vector.load %arg4[%c0_39, %c0_40] : memref<8x1xf32, #tpu.memory_space<vmem>>, vector<8x1xf32>
    %108 = vector.broadcast %107 : vector<8x1xf32> to vector<8x256xf32>
    %109 = arith.addf %106, %108 : vector<8x256xf32>
    %110 = arith.negf %109 : vector<8x256xf32>
    %111 = math.exp %110 : vector<8x256xf32>
    %cst_41 = arith.constant 1.000000e+00 : f32
    %112 = vector.broadcast %cst_41 : f32 to vector<8x256xf32>
    %113 = arith.addf %112, %111 : vector<8x256xf32>
    %114 = arith.divf %112, %113 : vector<8x256xf32>
    %115 = arith.mulf %109, %114 : vector<8x256xf32>
    %c5_42 = arith.constant 5 : index
    %c0_43 = arith.constant 0 : index
    %c0_44 = arith.constant 0 : index
    %116 = vector.load %arg5[%c5_42, %c0_43, %c0_44] : memref<11x8x256xf32, #tpu.memory_space<vmem>>, vector<1x8x256xf32>
    %117 = vector.shape_cast %116 : vector<1x8x256xf32> to vector<8x256xf32>
    %118 = arith.mulf %115, %117 : vector<8x256xf32>
    %119 = vector.extract_strided_slice %115 {offsets = [0, 251], sizes = [8, 5], strides = [1, 1]} : vector<8x256xf32> to vector<8x5xf32>
    %120 = vector.extract_strided_slice %115 {offsets = [0, 0], sizes = [8, 251], strides = [1, 1]} : vector<8x256xf32> to vector<8x251xf32>
    %121 = tpu.concatenate %119, %120 in 1 : vector<8x5xf32>, vector<8x251xf32> -> vector<8x256xf32>
    %c0_45 = arith.constant 0 : index
    %c0_46 = arith.constant 0 : index
    %c0_47 = arith.constant 0 : index
    %122 = vector.load %arg5[%c0_45, %c0_46, %c0_47] : memref<11x8x256xf32, #tpu.memory_space<vmem>>, vector<1x8x256xf32>
    %123 = vector.shape_cast %122 : vector<1x8x256xf32> to vector<8x256xf32>
    %124 = arith.mulf %121, %123 : vector<8x256xf32>
    %125 = vector.extract_strided_slice %115 {offsets = [0, 252], sizes = [8, 4], strides = [1, 1]} : vector<8x256xf32> to vector<8x4xf32>
    %126 = vector.extract_strided_slice %115 {offsets = [0, 0], sizes = [8, 252], strides = [1, 1]} : vector<8x256xf32> to vector<8x252xf32>
    %127 = tpu.concatenate %125, %126 in 1 : vector<8x4xf32>, vector<8x252xf32> -> vector<8x256xf32>
    %c1_48 = arith.constant 1 : index
    %c0_49 = arith.constant 0 : index
    %c0_50 = arith.constant 0 : index
    %128 = vector.load %arg5[%c1_48, %c0_49, %c0_50] : memref<11x8x256xf32, #tpu.memory_space<vmem>>, vector<1x8x256xf32>
    %129 = vector.shape_cast %128 : vector<1x8x256xf32> to vector<8x256xf32>
    %130 = arith.mulf %127, %129 : vector<8x256xf32>
    %131 = vector.extract_strided_slice %115 {offsets = [0, 253], sizes = [8, 3], strides = [1, 1]} : vector<8x256xf32> to vector<8x3xf32>
    %132 = vector.extract_strided_slice %115 {offsets = [0, 0], sizes = [8, 253], strides = [1, 1]} : vector<8x256xf32> to vector<8x253xf32>
    %133 = tpu.concatenate %131, %132 in 1 : vector<8x3xf32>, vector<8x253xf32> -> vector<8x256xf32>
    %c2_51 = arith.constant 2 : index
    %c0_52 = arith.constant 0 : index
    %c0_53 = arith.constant 0 : index
    %134 = vector.load %arg5[%c2_51, %c0_52, %c0_53] : memref<11x8x256xf32, #tpu.memory_space<vmem>>, vector<1x8x256xf32>
    %135 = vector.shape_cast %134 : vector<1x8x256xf32> to vector<8x256xf32>
    %136 = arith.mulf %133, %135 : vector<8x256xf32>
    %137 = vector.extract_strided_slice %115 {offsets = [0, 254], sizes = [8, 2], strides = [1, 1]} : vector<8x256xf32> to vector<8x2xf32>
    %138 = vector.extract_strided_slice %115 {offsets = [0, 0], sizes = [8, 254], strides = [1, 1]} : vector<8x256xf32> to vector<8x254xf32>
    %139 = tpu.concatenate %137, %138 in 1 : vector<8x2xf32>, vector<8x254xf32> -> vector<8x256xf32>
    %c3_54 = arith.constant 3 : index
    %c0_55 = arith.constant 0 : index
    %c0_56 = arith.constant 0 : index
    %140 = vector.load %arg5[%c3_54, %c0_55, %c0_56] : memref<11x8x256xf32, #tpu.memory_space<vmem>>, vector<1x8x256xf32>
    %141 = vector.shape_cast %140 : vector<1x8x256xf32> to vector<8x256xf32>
    %142 = arith.mulf %139, %141 : vector<8x256xf32>
    %143 = vector.extract_strided_slice %115 {offsets = [0, 255], sizes = [8, 1], strides = [1, 1]} : vector<8x256xf32> to vector<8x1xf32>
    %144 = vector.extract_strided_slice %115 {offsets = [0, 0], sizes = [8, 255], strides = [1, 1]} : vector<8x256xf32> to vector<8x255xf32>
    %145 = tpu.concatenate %143, %144 in 1 : vector<8x1xf32>, vector<8x255xf32> -> vector<8x256xf32>
    %c4_57 = arith.constant 4 : index
    %c0_58 = arith.constant 0 : index
    %c0_59 = arith.constant 0 : index
    %146 = vector.load %arg5[%c4_57, %c0_58, %c0_59] : memref<11x8x256xf32, #tpu.memory_space<vmem>>, vector<1x8x256xf32>
    %147 = vector.shape_cast %146 : vector<1x8x256xf32> to vector<8x256xf32>
    %148 = arith.mulf %145, %147 : vector<8x256xf32>
    %149 = vector.extract_strided_slice %115 {offsets = [0, 1], sizes = [8, 255], strides = [1, 1]} : vector<8x256xf32> to vector<8x255xf32>
    %150 = vector.extract_strided_slice %115 {offsets = [0, 0], sizes = [8, 1], strides = [1, 1]} : vector<8x256xf32> to vector<8x1xf32>
    %151 = tpu.concatenate %149, %150 in 1 : vector<8x255xf32>, vector<8x1xf32> -> vector<8x256xf32>
    %c6_60 = arith.constant 6 : index
    %c0_61 = arith.constant 0 : index
    %c0_62 = arith.constant 0 : index
    %152 = vector.load %arg5[%c6_60, %c0_61, %c0_62] : memref<11x8x256xf32, #tpu.memory_space<vmem>>, vector<1x8x256xf32>
    %153 = vector.shape_cast %152 : vector<1x8x256xf32> to vector<8x256xf32>
    %154 = arith.mulf %151, %153 : vector<8x256xf32>
    %155 = vector.extract_strided_slice %115 {offsets = [0, 2], sizes = [8, 254], strides = [1, 1]} : vector<8x256xf32> to vector<8x254xf32>
    %156 = vector.extract_strided_slice %115 {offsets = [0, 0], sizes = [8, 2], strides = [1, 1]} : vector<8x256xf32> to vector<8x2xf32>
    %157 = tpu.concatenate %155, %156 in 1 : vector<8x254xf32>, vector<8x2xf32> -> vector<8x256xf32>
    %c7 = arith.constant 7 : index
    %c0_63 = arith.constant 0 : index
    %c0_64 = arith.constant 0 : index
    %158 = vector.load %arg5[%c7, %c0_63, %c0_64] : memref<11x8x256xf32, #tpu.memory_space<vmem>>, vector<1x8x256xf32>
    %159 = vector.shape_cast %158 : vector<1x8x256xf32> to vector<8x256xf32>
    %160 = arith.mulf %157, %159 : vector<8x256xf32>
    %161 = vector.extract_strided_slice %115 {offsets = [0, 3], sizes = [8, 253], strides = [1, 1]} : vector<8x256xf32> to vector<8x253xf32>
    %162 = vector.extract_strided_slice %115 {offsets = [0, 0], sizes = [8, 3], strides = [1, 1]} : vector<8x256xf32> to vector<8x3xf32>
    %163 = tpu.concatenate %161, %162 in 1 : vector<8x253xf32>, vector<8x3xf32> -> vector<8x256xf32>
    %c8 = arith.constant 8 : index
    %c0_65 = arith.constant 0 : index
    %c0_66 = arith.constant 0 : index
    %164 = vector.load %arg5[%c8, %c0_65, %c0_66] : memref<11x8x256xf32, #tpu.memory_space<vmem>>, vector<1x8x256xf32>
    %165 = vector.shape_cast %164 : vector<1x8x256xf32> to vector<8x256xf32>
    %166 = arith.mulf %163, %165 : vector<8x256xf32>
    %167 = vector.extract_strided_slice %115 {offsets = [0, 4], sizes = [8, 252], strides = [1, 1]} : vector<8x256xf32> to vector<8x252xf32>
    %168 = vector.extract_strided_slice %115 {offsets = [0, 0], sizes = [8, 4], strides = [1, 1]} : vector<8x256xf32> to vector<8x4xf32>
    %169 = tpu.concatenate %167, %168 in 1 : vector<8x252xf32>, vector<8x4xf32> -> vector<8x256xf32>
    %c9 = arith.constant 9 : index
    %c0_67 = arith.constant 0 : index
    %c0_68 = arith.constant 0 : index
    %170 = vector.load %arg5[%c9, %c0_67, %c0_68] : memref<11x8x256xf32, #tpu.memory_space<vmem>>, vector<1x8x256xf32>
    %171 = vector.shape_cast %170 : vector<1x8x256xf32> to vector<8x256xf32>
    %172 = arith.mulf %169, %171 : vector<8x256xf32>
    %173 = vector.extract_strided_slice %115 {offsets = [0, 5], sizes = [8, 251], strides = [1, 1]} : vector<8x256xf32> to vector<8x251xf32>
    %174 = vector.extract_strided_slice %115 {offsets = [0, 0], sizes = [8, 5], strides = [1, 1]} : vector<8x256xf32> to vector<8x5xf32>
    %175 = tpu.concatenate %173, %174 in 1 : vector<8x251xf32>, vector<8x5xf32> -> vector<8x256xf32>
    %c10 = arith.constant 10 : index
    %c0_69 = arith.constant 0 : index
    %c0_70 = arith.constant 0 : index
    %176 = vector.load %arg5[%c10, %c0_69, %c0_70] : memref<11x8x256xf32, #tpu.memory_space<vmem>>, vector<1x8x256xf32>
    %177 = vector.shape_cast %176 : vector<1x8x256xf32> to vector<8x256xf32>
    %178 = arith.mulf %175, %177 : vector<8x256xf32>
    %179 = arith.addf %118, %130 : vector<8x256xf32>
    %180 = arith.addf %179, %142 : vector<8x256xf32>
    %181 = arith.addf %180, %154 : vector<8x256xf32>
    %182 = arith.addf %181, %166 : vector<8x256xf32>
    %183 = arith.addf %182, %178 : vector<8x256xf32>
    %184 = arith.addf %124, %136 : vector<8x256xf32>
    %185 = arith.addf %184, %148 : vector<8x256xf32>
    %186 = arith.addf %185, %160 : vector<8x256xf32>
    %187 = arith.addf %186, %172 : vector<8x256xf32>
    %188 = arith.addf %183, %187 : vector<8x256xf32>
    %c5_71 = arith.constant 5 : index
    %c0_72 = arith.constant 0 : index
    %c0_73 = arith.constant 0 : index
    %189 = vector.load %arg6[%c5_71, %c0_72, %c0_73] : memref<11x8x256xf32, #tpu.memory_space<vmem>>, vector<1x8x256xf32>
    %190 = vector.shape_cast %189 : vector<1x8x256xf32> to vector<8x256xf32>
    %191 = arith.mulf %188, %190 : vector<8x256xf32>
    %192 = vector.extract_strided_slice %188 {offsets = [0, 176], sizes = [8, 80], strides = [1, 1]} : vector<8x256xf32> to vector<8x80xf32>
    %193 = vector.extract_strided_slice %188 {offsets = [0, 0], sizes = [8, 176], strides = [1, 1]} : vector<8x256xf32> to vector<8x176xf32>
    %194 = tpu.concatenate %192, %193 in 1 : vector<8x80xf32>, vector<8x176xf32> -> vector<8x256xf32>
    %c0_74 = arith.constant 0 : index
    %c0_75 = arith.constant 0 : index
    %c0_76 = arith.constant 0 : index
    %195 = vector.load %arg6[%c0_74, %c0_75, %c0_76] : memref<11x8x256xf32, #tpu.memory_space<vmem>>, vector<1x8x256xf32>
    %196 = vector.shape_cast %195 : vector<1x8x256xf32> to vector<8x256xf32>
    %197 = arith.mulf %194, %196 : vector<8x256xf32>
    %198 = vector.extract_strided_slice %188 {offsets = [0, 192], sizes = [8, 64], strides = [1, 1]} : vector<8x256xf32> to vector<8x64xf32>
    %199 = vector.extract_strided_slice %188 {offsets = [0, 0], sizes = [8, 192], strides = [1, 1]} : vector<8x256xf32> to vector<8x192xf32>
    %200 = tpu.concatenate %198, %199 in 1 : vector<8x64xf32>, vector<8x192xf32> -> vector<8x256xf32>
    %c1_77 = arith.constant 1 : index
    %c0_78 = arith.constant 0 : index
    %c0_79 = arith.constant 0 : index
    %201 = vector.load %arg6[%c1_77, %c0_78, %c0_79] : memref<11x8x256xf32, #tpu.memory_space<vmem>>, vector<1x8x256xf32>
    %202 = vector.shape_cast %201 : vector<1x8x256xf32> to vector<8x256xf32>
    %203 = arith.mulf %200, %202 : vector<8x256xf32>
    %204 = vector.extract_strided_slice %188 {offsets = [0, 208], sizes = [8, 48], strides = [1, 1]} : vector<8x256xf32> to vector<8x48xf32>
    %205 = vector.extract_strided_slice %188 {offsets = [0, 0], sizes = [8, 208], strides = [1, 1]} : vector<8x256xf32> to vector<8x208xf32>
    %206 = tpu.concatenate %204, %205 in 1 : vector<8x48xf32>, vector<8x208xf32> -> vector<8x256xf32>
    %c2_80 = arith.constant 2 : index
    %c0_81 = arith.constant 0 : index
    %c0_82 = arith.constant 0 : index
    %207 = vector.load %arg6[%c2_80, %c0_81, %c0_82] : memref<11x8x256xf32, #tpu.memory_space<vmem>>, vector<1x8x256xf32>
    %208 = vector.shape_cast %207 : vector<1x8x256xf32> to vector<8x256xf32>
    %209 = arith.mulf %206, %208 : vector<8x256xf32>
    %210 = vector.extract_strided_slice %188 {offsets = [0, 224], sizes = [8, 32], strides = [1, 1]} : vector<8x256xf32> to vector<8x32xf32>
    %211 = vector.extract_strided_slice %188 {offsets = [0, 0], sizes = [8, 224], strides = [1, 1]} : vector<8x256xf32> to vector<8x224xf32>
    %212 = tpu.concatenate %210, %211 in 1 : vector<8x32xf32>, vector<8x224xf32> -> vector<8x256xf32>
    %c3_83 = arith.constant 3 : index
    %c0_84 = arith.constant 0 : index
    %c0_85 = arith.constant 0 : index
    %213 = vector.load %arg6[%c3_83, %c0_84, %c0_85] : memref<11x8x256xf32, #tpu.memory_space<vmem>>, vector<1x8x256xf32>
    %214 = vector.shape_cast %213 : vector<1x8x256xf32> to vector<8x256xf32>
    %215 = arith.mulf %212, %214 : vector<8x256xf32>
    %216 = vector.extract_strided_slice %188 {offsets = [0, 240], sizes = [8, 16], strides = [1, 1]} : vector<8x256xf32> to vector<8x16xf32>
    %217 = vector.extract_strided_slice %188 {offsets = [0, 0], sizes = [8, 240], strides = [1, 1]} : vector<8x256xf32> to vector<8x240xf32>
    %218 = tpu.concatenate %216, %217 in 1 : vector<8x16xf32>, vector<8x240xf32> -> vector<8x256xf32>
    %c4_86 = arith.constant 4 : index
    %c0_87 = arith.constant 0 : index
    %c0_88 = arith.constant 0 : index
    %219 = vector.load %arg6[%c4_86, %c0_87, %c0_88] : memref<11x8x256xf32, #tpu.memory_space<vmem>>, vector<1x8x256xf32>
    %220 = vector.shape_cast %219 : vector<1x8x256xf32> to vector<8x256xf32>
    %221 = arith.mulf %218, %220 : vector<8x256xf32>
    %222 = vector.extract_strided_slice %188 {offsets = [0, 16], sizes = [8, 240], strides = [1, 1]} : vector<8x256xf32> to vector<8x240xf32>
    %223 = vector.extract_strided_slice %188 {offsets = [0, 0], sizes = [8, 16], strides = [1, 1]} : vector<8x256xf32> to vector<8x16xf32>
    %224 = tpu.concatenate %222, %223 in 1 : vector<8x240xf32>, vector<8x16xf32> -> vector<8x256xf32>
    %c6_89 = arith.constant 6 : index
    %c0_90 = arith.constant 0 : index
    %c0_91 = arith.constant 0 : index
    %225 = vector.load %arg6[%c6_89, %c0_90, %c0_91] : memref<11x8x256xf32, #tpu.memory_space<vmem>>, vector<1x8x256xf32>
    %226 = vector.shape_cast %225 : vector<1x8x256xf32> to vector<8x256xf32>
    %227 = arith.mulf %224, %226 : vector<8x256xf32>
    %228 = vector.extract_strided_slice %188 {offsets = [0, 32], sizes = [8, 224], strides = [1, 1]} : vector<8x256xf32> to vector<8x224xf32>
    %229 = vector.extract_strided_slice %188 {offsets = [0, 0], sizes = [8, 32], strides = [1, 1]} : vector<8x256xf32> to vector<8x32xf32>
    %230 = tpu.concatenate %228, %229 in 1 : vector<8x224xf32>, vector<8x32xf32> -> vector<8x256xf32>
    %c7_92 = arith.constant 7 : index
    %c0_93 = arith.constant 0 : index
    %c0_94 = arith.constant 0 : index
    %231 = vector.load %arg6[%c7_92, %c0_93, %c0_94] : memref<11x8x256xf32, #tpu.memory_space<vmem>>, vector<1x8x256xf32>
    %232 = vector.shape_cast %231 : vector<1x8x256xf32> to vector<8x256xf32>
    %233 = arith.mulf %230, %232 : vector<8x256xf32>
    %234 = vector.extract_strided_slice %188 {offsets = [0, 48], sizes = [8, 208], strides = [1, 1]} : vector<8x256xf32> to vector<8x208xf32>
    %235 = vector.extract_strided_slice %188 {offsets = [0, 0], sizes = [8, 48], strides = [1, 1]} : vector<8x256xf32> to vector<8x48xf32>
    %236 = tpu.concatenate %234, %235 in 1 : vector<8x208xf32>, vector<8x48xf32> -> vector<8x256xf32>
    %c8_95 = arith.constant 8 : index
    %c0_96 = arith.constant 0 : index
    %c0_97 = arith.constant 0 : index
    %237 = vector.load %arg6[%c8_95, %c0_96, %c0_97] : memref<11x8x256xf32, #tpu.memory_space<vmem>>, vector<1x8x256xf32>
    %238 = vector.shape_cast %237 : vector<1x8x256xf32> to vector<8x256xf32>
    %239 = arith.mulf %236, %238 : vector<8x256xf32>
    %240 = vector.extract_strided_slice %188 {offsets = [0, 64], sizes = [8, 192], strides = [1, 1]} : vector<8x256xf32> to vector<8x192xf32>
    %241 = vector.extract_strided_slice %188 {offsets = [0, 0], sizes = [8, 64], strides = [1, 1]} : vector<8x256xf32> to vector<8x64xf32>
    %242 = tpu.concatenate %240, %241 in 1 : vector<8x192xf32>, vector<8x64xf32> -> vector<8x256xf32>
    %c9_98 = arith.constant 9 : index
    %c0_99 = arith.constant 0 : index
    %c0_100 = arith.constant 0 : index
    %243 = vector.load %arg6[%c9_98, %c0_99, %c0_100] : memref<11x8x256xf32, #tpu.memory_space<vmem>>, vector<1x8x256xf32>
    %244 = vector.shape_cast %243 : vector<1x8x256xf32> to vector<8x256xf32>
    %245 = arith.mulf %242, %244 : vector<8x256xf32>
    %246 = vector.extract_strided_slice %188 {offsets = [0, 80], sizes = [8, 176], strides = [1, 1]} : vector<8x256xf32> to vector<8x176xf32>
    %247 = vector.extract_strided_slice %188 {offsets = [0, 0], sizes = [8, 80], strides = [1, 1]} : vector<8x256xf32> to vector<8x80xf32>
    %248 = tpu.concatenate %246, %247 in 1 : vector<8x176xf32>, vector<8x80xf32> -> vector<8x256xf32>
    %c10_101 = arith.constant 10 : index
    %c0_102 = arith.constant 0 : index
    %c0_103 = arith.constant 0 : index
    %249 = vector.load %arg6[%c10_101, %c0_102, %c0_103] : memref<11x8x256xf32, #tpu.memory_space<vmem>>, vector<1x8x256xf32>
    %250 = vector.shape_cast %249 : vector<1x8x256xf32> to vector<8x256xf32>
    %251 = arith.mulf %248, %250 : vector<8x256xf32>
    %252 = arith.addf %191, %203 : vector<8x256xf32>
    %253 = arith.addf %252, %215 : vector<8x256xf32>
    %254 = arith.addf %253, %227 : vector<8x256xf32>
    %255 = arith.addf %254, %239 : vector<8x256xf32>
    %256 = arith.addf %255, %251 : vector<8x256xf32>
    %257 = arith.addf %197, %209 : vector<8x256xf32>
    %258 = arith.addf %257, %221 : vector<8x256xf32>
    %259 = arith.addf %258, %233 : vector<8x256xf32>
    %260 = arith.addf %259, %245 : vector<8x256xf32>
    %261 = arith.addf %256, %260 : vector<8x256xf32>
    %c0_104 = arith.constant 0 : index
    %c0_105 = arith.constant 0 : index
    %262 = vector.load %arg7[%c0_104, %c0_105] : memref<8x8xf32, #tpu.memory_space<vmem>>, vector<8x8xf32>
    %cst_106 = arith.constant dense<0.000000e+00> : vector<8x256xf32>
    %263 = tpu.matmul %262, %261, %cst_106 {dimension_numbers = #tpu.dot_dimension_numbers<[1], [0], [0], [1], [0, 0, 1, 1], [], []>} : vector<8x8xf32>, vector<8x256xf32>, vector<8x256xf32> -> vector<8x256xf32>
    %c0_107 = arith.constant 0 : index
    %c0_108 = arith.constant 0 : index
    %264 = vector.load %arg8[%c0_107, %c0_108] : memref<8x256xf32, #tpu.memory_space<vmem>>, vector<8x256xf32>
    %265 = arith.addf %263, %264 : vector<8x256xf32>
    %266 = arith.negf %265 : vector<8x256xf32>
    %267 = math.exp %266 : vector<8x256xf32>
    %cst_109 = arith.constant 1.000000e+00 : f32
    %268 = vector.broadcast %cst_109 : f32 to vector<8x256xf32>
    %269 = arith.addf %268, %267 : vector<8x256xf32>
    %270 = arith.divf %268, %269 : vector<8x256xf32>
    %271 = arith.mulf %265, %270 : vector<8x256xf32>
    %272 = arith.negf %271 : vector<8x256xf32>
    %273 = math.exp %272 : vector<8x256xf32>
    %cst_110 = arith.constant 1.000000e+00 : f32
    %274 = vector.broadcast %cst_110 : f32 to vector<8x256xf32>
    %275 = arith.addf %274, %273 : vector<8x256xf32>
    %276 = arith.divf %274, %275 : vector<8x256xf32>
    %277 = arith.mulf %276, %0 : vector<8x256xf32>
    %c0_111 = arith.constant 0 : index
    %c0_112 = arith.constant 0 : index
    %278 = vector.load %arg9[%c0_111, %c0_112] : memref<8x256xf32, #tpu.memory_space<vmem>>, vector<8x256xf32>
    tpu.vector_store %arg9[%c0_111, %c0_112], %277 {strides = array<i32>} : memref<8x256xf32, #tpu.memory_space<vmem>>, vector<8x256xf32>,
    return
  }
}

</mosaic_0001>

<llo_original>
// kernel: tpu_custom_call.1
$region0: #{tpu_custom_call.1}
  #allocation0 [shape = 'u32[]', space=smem, size = 0x4, offset = 0x4, fixed_abs, tag = 'smem constant byte address 0x4 - core index']
  #allocation1 [shape = 'u32[144,128]{1,0:T(1,128)}', space=vmem, size = 0x12000, scoped, tag = 'internal scratch']
  %s0 = inlined_call_operand.hbm [shape: f32[8,256], index: 0, kind: input, shape index: {}]
  %s1 = inlined_call_operand.hbm [shape: f32[7,1,256], index: 1, kind: input, shape index: {}]
  %s2 = inlined_call_operand.vmem [shape: f32[7,1,256], index: 2, kind: input, shape index: {}]
  %s3 = inlined_call_operand.hbm [shape: f32[8,8], index: 3, kind: input, shape index: {}]
  %s4 = inlined_call_operand.vmem [shape: f32[8,1], index: 4, kind: input, shape index: {}]
  %s5 = inlined_call_operand.hbm [shape: f32[11,8,256], index: 5, kind: input, shape index: {}]
  %s6 = inlined_call_operand.hbm [shape: f32[11,8,256], index: 6, kind: input, shape index: {}]
  %s7 = inlined_call_operand.hbm [shape: f32[8,8], index: 7, kind: input, shape index: {}]
  %s8 = inlined_call_operand.vmem [shape: f32[8,256], index: 8, kind: input, shape index: {}]
  %s9 = inlined_call_operand.hbm [shape: f32[8,256], index: 9, kind: output, shape index: {}]
  %s10 = sld [smem:[#allocation0]]
  $region70: #{tpu_custom_call.1} parent=0
    _
  %s12 = ssub.s32 1, %s10
  %s13 = scalar_select 0, %s12, %s10
  $region1: #{tpu_custom_call.1} parent=0
    #allocation2 [shape = 'u8[8192]{0}', space=vmem, size = 0x2000, scoped, tag = 'input window, operand 0, single buffered']
    #allocation3 [shape = 's32[1]{0}', space=sflag, size = 0x4, scoped, tag = 'scoped memory for tpu_custom_call.1']
    #allocation4 [shape = 's32[1]{0}', space=sflag, size = 0x4, scoped, tag = 'scoped memory for tpu_custom_call.1']
    #allocation5 [shape = 'u8[7168]{0}', space=vmem, size = 0x1c00, scoped, tag = 'input window, operand 1, single buffered']
    #allocation6 [shape = 's32[1]{0}', space=sflag, size = 0x4, scoped, tag = 'scoped memory for tpu_custom_call.1']
    #allocation7 [shape = 'u8[4096]{0}', space=vmem, size = 0x1000, scoped, tag = 'input window, operand 3, single buffered']
    #allocation8 [shape = 'u8[90112]{0}', space=vmem, size = 0x16000, scoped, tag = 'input window, operand 5, single buffered']
    #allocation9 [shape = 's32[1]{0}', space=sflag, size = 0x4, scoped, tag = 'scoped memory for tpu_custom_call.1']
    #allocation10 [shape = 'u8[90112]{0}', space=vmem, size = 0x16000, scoped, tag = 'input window, operand 6, single buffered']
    #allocation11 [shape = 'u8[4096]{0}', space=vmem, size = 0x1000, scoped, tag = 'input window, operand 7, single buffered']
    #allocation12 [shape = 's32[1]{0}', space=sflag, size = 0x4, scoped, tag = 'scoped memory for tpu_custom_call.1']
    #allocation13 [shape = 'u8[8192]{0}', space=vmem, size = 0x2000, scoped, tag = 'output window, operand 0, single buffered']
    %14 = vsyncpa [#allocation3], 0
    %15 = vsyncpa [#allocation6], 0
    %16 = vsyncpa [#allocation9], 0
    %17 = vsyncpa [#allocation12], 0
    %18 = vsyncpa [#allocation4], 0
    // Predicated region
    $region2: #{tpu_custom_call.1} parent=1 // pred_check
      _
    $region3: #{tpu_custom_call.1} parent=1 // pred_check_branch
      %20 = sbr.rel (0) target = $region5
    $region4: #{tpu_custom_call.1} parent=1 // pred_region
      %s22 = ssub.s32 256, 256
      %23 = vsyncadd [#allocation3], %s22
      %s25 = sshll.u32 [#allocation2], 4
      %s26 = int_to_ptr.vmem [resolvable:$true] %s25
      %28 = dma.hbm_to_vmem [thread:$0]  %s0, 256, %s26, [#allocation3]
    $region5: #{tpu_custom_call.1} parent=1 // pred_fallthru
      _
    // Predicated region
    $region6: #{tpu_custom_call.1} parent=1 // pred_check
      _
    $region7: #{tpu_custom_call.1} parent=1 // pred_check_branch
      %30 = sbr.rel (0) target = $region9
    $region8: #{tpu_custom_call.1} parent=1 // pred_region
      %s32 = ssub.s32 224, 224
      %33 = vsyncadd [#allocation6], %s32
      %s34 = sshll.u32 [#allocation5], 4
      %s35 = int_to_ptr.vmem [resolvable:$true] %s34
      %40 = dma.hbm_to_vmem [thread:$0]  %s1, 224, %s35, [#allocation6], 32, 32, 2
    $region9: #{tpu_custom_call.1} parent=1 // pred_fallthru
      _
    // Predicated region
    $region10: #{tpu_custom_call.1} parent=1 // pred_check
      _
    $region11: #{tpu_custom_call.1} parent=1 // pred_check_branch
      %42 = sbr.rel (0) target = $region13
    $region12: #{tpu_custom_call.1} parent=1 // pred_region
      _
    $region13: #{tpu_custom_call.1} parent=1 // pred_fallthru
      _
    // Predicated region
    $region14: #{tpu_custom_call.1} parent=1 // pred_check
      _
    $region15: #{tpu_custom_call.1} parent=1 // pred_check_branch
      %44 = sbr.rel (0) target = $region17
    $region16: #{tpu_custom_call.1} parent=1 // pred_region
      %s46 = ssub.s32 128, 128
      %47 = vsyncadd [#allocation6], %s46
      %s49 = sshll.u32 [#allocation7], 4
      %s50 = int_to_ptr.vmem [resolvable:$true] %s49
      %52 = dma.hbm_to_vmem [thread:$0]  %s3, 128, %s50, [#allocation6]
    $region17: #{tpu_custom_call.1} parent=1 // pred_fallthru
      _
    // Predicated region
    $region18: #{tpu_custom_call.1} parent=1 // pred_check
      _
    $region19: #{tpu_custom_call.1} parent=1 // pred_check_branch
      %54 = sbr.rel (0) target = $region21
    $region20: #{tpu_custom_call.1} parent=1 // pred_region
      _
    $region21: #{tpu_custom_call.1} parent=1 // pred_fallthru
      _
    // Predicated region
    $region22: #{tpu_custom_call.1} parent=1 // pred_check
      _
    $region23: #{tpu_custom_call.1} parent=1 // pred_check_branch
      %56 = sbr.rel (0) target = $region25
    $region24: #{tpu_custom_call.1} parent=1 // pred_region
      %s58 = ssub.s32 2816, 2816
      %59 = vsyncadd [#allocation9], %s58
      %s60 = sshll.u32 [#allocation8], 4
      %s61 = int_to_ptr.vmem [resolvable:$true] %s60
      %66 = dma.hbm_to_vmem [thread:$0]  %s5, 2816, %s61, [#allocation9], 256, 256, 16
    $region25: #{tpu_custom_call.1} parent=1 // pred_fallthru
      _
    // Predicated region
    $region26: #{tpu_custom_call.1} parent=1 // pred_check
      _
    $region27: #{tpu_custom_call.1} parent=1 // pred_check_branch
      %68 = sbr.rel (0) target = $region29
    $region28: #{tpu_custom_call.1} parent=1 // pred_region
      %s70 = ssub.s32 2816, 2816
      %71 = vsyncadd [#allocation9], %s70
      %s72 = sshll.u32 [#allocation10], 4
      %s73 = int_to_ptr.vmem [resolvable:$true] %s72
      %78 = dma.hbm_to_vmem [thread:$0]  %s6, 2816, %s73, [#allocation9], 256, 256, 16
    $region29: #{tpu_custom_call.1} parent=1 // pred_fallthru
      _
    // Predicated region
    $region30: #{tpu_custom_call.1} parent=1 // pred_check
      _
    $region31: #{tpu_custom_call.1} parent=1 // pred_check_branch
      %80 = sbr.rel (0) target = $region33
    $region32: #{tpu_custom_call.1} parent=1 // pred_region
      %s82 = ssub.s32 128, 128
      %83 = vsyncadd [#allocation12], %s82
      %s85 = sshll.u32 [#allocation11], 4
      %s86 = int_to_ptr.vmem [resolvable:$true] %s85
      %88 = dma.hbm_to_vmem [thread:$0]  %s7, 128, %s86, [#allocation12]
    $region33: #{tpu_custom_call.1} parent=1 // pred_fallthru
      _
    // Predicated region
    $region34: #{tpu_custom_call.1} parent=1 // pred_check
      _
    $region35: #{tpu_custom_call.1} parent=1 // pred_check_branch
      %90 = sbr.rel (0) target = $region37
    $region36: #{tpu_custom_call.1} parent=1 // pred_region
      _
    $region37: #{tpu_custom_call.1} parent=1 // pred_fallthru
      _
    // Predicated region
    $region38: #{tpu_custom_call.1} parent=1 // pred_check
      _
    $region39: #{tpu_custom_call.1} parent=1 // pred_check_branch
      %92 = sbr.rel (0) target = $region41
    $region40: #{tpu_custom_call.1} parent=1 // pred_region
      %93 = dma.done [#allocation3], 256
    $region41: #{tpu_custom_call.1} parent=1 // pred_fallthru
      _
    // Predicated region
    $region42: #{tpu_custom_call.1} parent=1 // pred_check
      _
    $region43: #{tpu_custom_call.1} parent=1 // pred_check_branch
      %95 = sbr.rel (0) target = $region45
    $region44: #{tpu_custom_call.1} parent=1 // pred_region
      %96 = dma.done [#allocation6], 224
    $region45: #{tpu_custom_call.1} parent=1 // pred_fallthru
      _
    // Predicated region
    $region46: #{tpu_custom_call.1} parent=1 // pred_check
      _
    $region47: #{tpu_custom_call.1} parent=1 // pred_check_branch
      %98 = sbr.rel (0) target = $region49
    $region48: #{tpu_custom_call.1} parent=1 // pred_region
      %99 = dma.done [#allocation6], 128
    $region49: #{tpu_custom_call.1} parent=1 // pred_fallthru
      _
    // Predicated region
    $region50: #{tpu_custom_call.1} parent=1 // pred_check
      _
    $region51: #{tpu_custom_call.1} parent=1 // pred_check_branch
      %101 = sbr.rel (0) target = $region53
    $region52: #{tpu_custom_call.1} parent=1 // pred_region
      %102 = dma.done [#allocation9], 2816
    $region53: #{tpu_custom_call.1} parent=1 // pred_fallthru
      _
    // Predicated region
    $region54: #{tpu_custom_call.1} parent=1 // pred_check
      _
    $region55: #{tpu_custom_call.1} parent=1 // pred_check_branch
      %104 = sbr.rel (0) target = $region57
    $region56: #{tpu_custom_call.1} parent=1 // pred_region
      %105 = dma.done [#allocation9], 2816
    $region57: #{tpu_custom_call.1} parent=1 // pred_fallthru
      _
    // Predicated region
    $region58: #{tpu_custom_call.1} parent=1 // pred_check
      _
    $region59: #{tpu_custom_call.1} parent=1 // pred_check_branch
      %107 = sbr.rel (0) target = $region61
    $region60: #{tpu_custom_call.1} parent=1 // pred_region
      %108 = dma.done [#allocation12], 128
    $region61: #{tpu_custom_call.1} parent=1 // pred_fallthru
      _
    %v109 = vld [vmem:[#allocation2] sm:$0xff]
    %v110 = vld [vmem:[#allocation2 + $0x8] sm:$0xff]
    %s111 = scalar_lea.vmem [#allocation5], 6
    %v112 = vld [vmem:[%s111] sm:$0x3]
    %v114 = vlaneseq
    %v115 = vshrl.u32 %v114, 7
    %v116 = vsub.s32 0, %v115
    %v117 = vrot.slane %v112, %v116
    %v118 = vlaneseq
    %v119 = vshrl.u32 %v118, 7
    %v120 = vsub.s32 1, %v119
    %v121 = vrot.slane %v112, %v120
    %v124 = vmul.f32 %v109, %v117
    %v125 = vmul.f32 %v110, %v121
    %127 = vrot.lane.b32.xlu0 %v110, 3
    %v128 = vpop.permute.xlu0 %127
    %131 = vrot.lane.b32.xlu0 %v109, 3
    %v132 = vpop.permute.xlu0 %131
    %vm133 = vcmask 23552
    %v134 = vsel %vm133, %v132, %v128
    %v137 = vsel %vm133, %v128, %v132
    %v138 = vld [vmem:[#allocation5] sm:$0x3]
    %v140 = vlaneseq
    %v141 = vshrl.u32 %v140, 7
    %v142 = vsub.s32 0, %v141
    %v143 = vrot.slane %v138, %v142
    %v144 = vlaneseq
    %v145 = vshrl.u32 %v144, 7
    %v146 = vsub.s32 1, %v145
    %v147 = vrot.slane %v138, %v146
    %v150 = vmul.f32 %v137, %v143
    %v151 = vmul.f32 %v134, %v147
    %152 = vrot.lane.b32.xlu0 %v110, 2
    %v153 = vpop.permute.xlu0 %152
    %155 = vrot.lane.b32.xlu0 %v109, 2
    %v156 = vpop.permute.xlu0 %155
    %vm157 = vcmask 15360
    %v158 = vsel %vm157, %v156, %v153
    %v161 = vsel %vm157, %v153, %v156
    %s162 = scalar_lea.vmem [#allocation5], 2
    %v163 = vld [vmem:[%s162] sm:$0x3]
    %v165 = vlaneseq
    %v166 = vshrl.u32 %v165, 7
    %v167 = vsub.s32 0, %v166
    %v168 = vrot.slane %v163, %v167
    %v169 = vlaneseq
    %v170 = vshrl.u32 %v169, 7
    %v171 = vsub.s32 1, %v170
    %v172 = vrot.slane %v163, %v171
    %v175 = vmul.f32 %v161, %v168
    %v176 = vmul.f32 %v158, %v172
    %177 = vrot.lane.b32.xlu0 %v110, 1
    %v178 = vpop.permute.xlu0 %177
    %180 = vrot.lane.b32.xlu0 %v109, 1
    %v181 = vpop.permute.xlu0 %180
    %vm182 = vcmask 7168
    %v183 = vsel %vm182, %v181, %v178
    %v186 = vsel %vm182, %v178, %v181
    %s187 = scalar_lea.vmem [#allocation5], 4
    %v188 = vld [vmem:[%s187] sm:$0x3]
    %v190 = vlaneseq
    %v191 = vshrl.u32 %v190, 7
    %v192 = vsub.s32 0, %v191
    %v193 = vrot.slane %v188, %v192
    %v194 = vlaneseq
    %v195 = vshrl.u32 %v194, 7
    %v196 = vsub.s32 1, %v195
    %v197 = vrot.slane %v188, %v196
    %v200 = vmul.f32 %v186, %v193
    %v201 = vmul.f32 %v183, %v197
    %202 = vrot.lane.b32.xlu0 %v109, 127
    %v203 = vpop.permute.xlu0 %202
    %204 = vrot.lane.b32.xlu0 %v110, 127
    %v205 = vpop.permute.xlu0 %204
    %vm206 = vcmask 1039360
    %v207 = vsel %vm206, %v203, %v205
    %v211 = vsel %vm206, %v205, %v203
    %s212 = scalar_lea.vmem [#allocation5], 8
    %v213 = vld [vmem:[%s212] sm:$0x3]
    %v215 = vlaneseq
    %v216 = vshrl.u32 %v215, 7
    %v217 = vsub.s32 0, %v216
    %v218 = vrot.slane %v213, %v217
    %v219 = vlaneseq
    %v220 = vshrl.u32 %v219, 7
    %v221 = vsub.s32 1, %v220
    %v222 = vrot.slane %v213, %v221
    %v225 = vmul.f32 %v207, %v218
    %v226 = vmul.f32 %v211, %v222
    %227 = vrot.lane.b32.xlu0 %v109, 126
    %v228 = vpop.permute.xlu0 %227
    %229 = vrot.lane.b32.xlu0 %v110, 126
    %v230 = vpop.permute.xlu0 %229
    %vm231 = vcmask 1031168
    %v232 = vsel %vm231, %v228, %v230
    %v236 = vsel %vm231, %v230, %v228
    %s237 = scalar_lea.vmem [#allocation5], 10
    %v238 = vld [vmem:[%s237] sm:$0x3]
    %v240 = vlaneseq
    %v241 = vshrl.u32 %v240, 7
    %v242 = vsub.s32 0, %v241
    %v243 = vrot.slane %v238, %v242
    %v244 = vlaneseq
    %v245 = vshrl.u32 %v244, 7
    %v246 = vsub.s32 1, %v245
    %v247 = vrot.slane %v238, %v246
    %v250 = vmul.f32 %v232, %v243
    %v251 = vmul.f32 %v236, %v247
    %252 = vrot.lane.b32.xlu0 %v109, 125
    %v253 = vpop.permute.xlu0 %252
    %254 = vrot.lane.b32.xlu0 %v110, 125
    %v255 = vpop.permute.xlu0 %254
    %vm256 = vcmask 1022976
    %v257 = vsel %vm256, %v253, %v255
    %v261 = vsel %vm256, %v255, %v253
    %s262 = scalar_lea.vmem [#allocation5], 12
    %v263 = vld [vmem:[%s262] sm:$0x3]
    %v265 = vlaneseq
    %v266 = vshrl.u32 %v265, 7
    %v267 = vsub.s32 0, %v266
    %v268 = vrot.slane %v263, %v267
    %v269 = vlaneseq
    %v270 = vshrl.u32 %v269, 7
    %v271 = vsub.s32 1, %v270
    %v272 = vrot.slane %v263, %v271
    %v275 = vmul.f32 %v257, %v268
    %v276 = vmul.f32 %v261, %v272
    %v277 = vadd.f32 %v124, %v175
    %v278 = vadd.f32 %v125, %v176
    %v279 = vadd.f32 %v277, %v225
    %v280 = vadd.f32 %v278, %v226
    %v281 = vadd.f32 %v279, %v275
    %v282 = vadd.f32 %v280, %v276
    %v283 = vadd.f32 %v150, %v200
    %v284 = vadd.f32 %v151, %v201
    %v285 = vadd.f32 %v283, %v250
    %v286 = vadd.f32 %v284, %v251
    %v287 = vadd.f32 %v281, %v285
    %v288 = vadd.f32 %v282, %v286
    %s289 = scalar_lea.vmem %s2, 6
    %v290 = vld [vmem:[%s289] sm:$0x3]
    %v292 = vlaneseq
    %v293 = vshrl.u32 %v292, 7
    %v294 = vsub.s32 0, %v293
    %v295 = vrot.slane %v290, %v294
    %v296 = vlaneseq
    %v297 = vshrl.u32 %v296, 7
    %v298 = vsub.s32 1, %v297
    %v299 = vrot.slane %v290, %v298
    %v302 = vmul.f32 %v287, %v295
    %v303 = vmul.f32 %v288, %v299
    %305 = vrot.lane.b32.xlu0 %v288, 48
    %v306 = vpop.permute.xlu0 %305
    %309 = vrot.lane.b32.xlu0 %v287, 48
    %v310 = vpop.permute.xlu0 %309
    %vm311 = vcmask 392192
    %v312 = vsel %vm311, %v310, %v306
    %v315 = vsel %vm311, %v306, %v310
    %v316 = vld [vmem:[%s2] sm:$0x3]
    %v318 = vlaneseq
    %v319 = vshrl.u32 %v318, 7
    %v320 = vsub.s32 0, %v319
    %v321 = vrot.slane %v316, %v320
    %v322 = vlaneseq
    %v323 = vshrl.u32 %v322, 7
    %v324 = vsub.s32 1, %v323
    %v325 = vrot.slane %v316, %v324
    %v328 = vmul.f32 %v315, %v321
    %v329 = vmul.f32 %v312, %v325
    %330 = vrot.lane.b32.xlu0 %v288, 32
    %v331 = vpop.permute.xlu0 %330
    %333 = vrot.lane.b32.xlu0 %v287, 32
    %v334 = vpop.permute.xlu0 %333
    %vm335 = vcmask 261120
    %v336 = vsel %vm335, %v334, %v331
    %v339 = vsel %vm335, %v331, %v334
    %s340 = scalar_lea.vmem %s2, 2
    %v341 = vld [vmem:[%s340] sm:$0x3]
    %v343 = vlaneseq
    %v344 = vshrl.u32 %v343, 7
    %v345 = vsub.s32 0, %v344
    %v346 = vrot.slane %v341, %v345
    %v347 = vlaneseq
    %v348 = vshrl.u32 %v347, 7
    %v349 = vsub.s32 1, %v348
    %v350 = vrot.slane %v341, %v349
    %v353 = vmul.f32 %v339, %v346
    %v354 = vmul.f32 %v336, %v350
    %355 = vrot.lane.b32.xlu0 %v288, 16
    %v356 = vpop.permute.xlu0 %355
    %358 = vrot.lane.b32.xlu0 %v287, 16
    %v359 = vpop.permute.xlu0 %358
    %vm360 = vcmask 130048
    %v361 = vsel %vm360, %v359, %v356
    %v364 = vsel %vm360, %v356, %v359
    %s365 = scalar_lea.vmem %s2, 4
    %v366 = vld [vmem:[%s365] sm:$0x3]
    %v368 = vlaneseq
    %v369 = vshrl.u32 %v368, 7
    %v370 = vsub.s32 0, %v369
    %v371 = vrot.slane %v366, %v370
    %v372 = vlaneseq
    %v373 = vshrl.u32 %v372, 7
    %v374 = vsub.s32 1, %v373
    %v375 = vrot.slane %v366, %v374
    %v378 = vmul.f32 %v364, %v371
    %v379 = vmul.f32 %v361, %v375
    %380 = vrot.lane.b32.xlu0 %v287, 112
    %v381 = vpop.permute.xlu0 %380
    %382 = vrot.lane.b32.xlu0 %v288, 112
    %v383 = vpop.permute.xlu0 %382
    %vm384 = vcmask 916480
    %v385 = vsel %vm384, %v381, %v383
    %v389 = vsel %vm384, %v383, %v381
    %s390 = scalar_lea.vmem %s2, 8
    %v391 = vld [vmem:[%s390] sm:$0x3]
    %v393 = vlaneseq
    %v394 = vshrl.u32 %v393, 7
    %v395 = vsub.s32 0, %v394
    %v396 = vrot.slane %v391, %v395
    %v397 = vlaneseq
    %v398 = vshrl.u32 %v397, 7
    %v399 = vsub.s32 1, %v398
    %v400 = vrot.slane %v391, %v399
    %v403 = vmul.f32 %v385, %v396
    %v404 = vmul.f32 %v389, %v400
    %405 = vrot.lane.b32.xlu0 %v287, 96
    %v406 = vpop.permute.xlu0 %405
    %407 = vrot.lane.b32.xlu0 %v288, 96
    %v408 = vpop.permute.xlu0 %407
    %vm409 = vcmask 785408
    %v410 = vsel %vm409, %v406, %v408
    %v414 = vsel %vm409, %v408, %v406
    %s415 = scalar_lea.vmem %s2, 10
    %v416 = vld [vmem:[%s415] sm:$0x3]
    %v418 = vlaneseq
    %v419 = vshrl.u32 %v418, 7
    %v420 = vsub.s32 0, %v419
    %v421 = vrot.slane %v416, %v420
    %v422 = vlaneseq
    %v423 = vshrl.u32 %v422, 7
    %v424 = vsub.s32 1, %v423
    %v425 = vrot.slane %v416, %v424
    %v428 = vmul.f32 %v410, %v421
    %v429 = vmul.f32 %v414, %v425
    %430 = vrot.lane.b32.xlu0 %v287, 80
    %v431 = vpop.permute.xlu0 %430
    %432 = vrot.lane.b32.xlu0 %v288, 80
    %v433 = vpop.permute.xlu0 %432
    %vm434 = vcmask 654336
    %v435 = vsel %vm434, %v431, %v433
    %v439 = vsel %vm434, %v433, %v431
    %s440 = scalar_lea.vmem %s2, 12
    %v441 = vld [vmem:[%s440] sm:$0x3]
    %v443 = vlaneseq
    %v444 = vshrl.u32 %v443, 7
    %v445 = vsub.s32 0, %v444
    %v446 = vrot.slane %v441, %v445
    %v447 = vlaneseq
    %v448 = vshrl.u32 %v447, 7
    %v449 = vsub.s32 1, %v448
    %v450 = vrot.slane %v441, %v449
    %v453 = vmul.f32 %v435, %v446
    %v454 = vmul.f32 %v439, %v450
    %v455 = vadd.f32 %v302, %v353
    %v456 = vadd.f32 %v303, %v354
    %v457 = vadd.f32 %v455, %v403
    %v458 = vadd.f32 %v456, %v404
    %v459 = vadd.f32 %v457, %v453
    %v460 = vadd.f32 %v458, %v454
    %v461 = vadd.f32 %v328, %v378
    %v462 = vadd.f32 %v329, %v379
    %v463 = vadd.f32 %v461, %v428
    %v464 = vadd.f32 %v462, %v429
    %v465 = vadd.f32 %v459, %v463
    %v466 = vadd.f32 %v460, %v464
    %v467 = vld [vmem:[#allocation7] sm:$0xff]
    %v468 = vld [vmem:[%s4] sm:$0xff]
    %470 = vset.pattern.permute.xlu0 0
    %471 = vperm.xlu0 %470, %v468
    %v472 = vpop.permute.xlu0 %471
    %vm474 = vcmask 64512
    %v476 = vsel %vm474, %v467, 0
    %478 = vmatprep.subr.mxu0 %v466
    %479 = vmatpush1.msra.mxu0 %v465
    %480 = vmatprep.subr.mxu0 0.0
    %481 = vmatpush1.msra.mxu0 0.0
    %482 = vmatprep.subr.mxu0 0.0
    %483 = vmatpush1.msra.mxu0 0.0
    %484 = vmatprep.subr.mxu0 0.0
    %485 = vmatpush1.msra.mxu0 0.0
    %486 = vmatprep.subr.mxu0 0.0
    %487 = vmatpush1.msra.mxu0 0.0
    %488 = vmatprep.subr.mxu0 0.0
    %489 = vmatpush1.msra.mxu0 0.0
    %490 = vmatprep.subr.mxu0 0.0
    %491 = vmatpush1.msra.mxu0 0.0
    %492 = vmatprep.subr.mxu0 0.0
    %493 = vmatpush1.msra.mxu0 0.0
    %494 = vmatprep.subr.mxu0 0.0
    %495 = vmatpush1.msra.mxu0 0.0
    %496 = vmatprep.subr.mxu0 0.0
    %497 = vmatpush1.msra.mxu0 0.0
    %498 = vmatprep.subr.mxu0 0.0
    %499 = vmatpush1.msra.mxu0 0.0
    %500 = vmatprep.subr.mxu0 0.0
    %501 = vmatpush1.msra.mxu0 0.0
    %502 = vmatprep.subr.mxu0 0.0
    %503 = vmatpush1.msra.mxu0 0.0
    %504 = vmatprep.subr.mxu0 0.0
    %505 = vmatpush1.msra.mxu0 0.0
    %506 = vmatprep.subr.mxu0 0.0
    %507 = vmatpush1.msra.mxu0 0.0
    %508 = vmatprep.subr.mxu0 0.0
    %509 = vmatpush1.msra.mxu0 0.0
    %510 = vmatprep.subr.mxu0 0.0
    %511 = vmatpush1.msra.mxu0 0.0
    %512 = vmatprep.subr.mxu0 0.0
    %513 = vmatpush1.msra.mxu0 0.0
    %514 = vmatprep.subr.mxu0 0.0
    %515 = vmatpush1.msra.mxu0 0.0
    %516 = vmatprep.subr.mxu0 0.0
    %517 = vmatpush1.msra.mxu0 0.0
    %518 = vmatprep.subr.mxu0 0.0
    %519 = vmatpush1.msra.mxu0 0.0
    %520 = vmatprep.subr.mxu0 0.0
    %521 = vmatpush1.msra.mxu0 0.0
    %522 = vmatprep.subr.mxu0 0.0
    %523 = vmatpush1.msra.mxu0 0.0
    %524 = vmatprep.subr.mxu0 0.0
    %525 = vmatpush1.msra.mxu0 0.0
    %526 = vmatprep.subr.mxu0 0.0
    %527 = vmatpush1.msra.mxu0 0.0
    %528 = vmatprep.subr.mxu0 0.0
    %529 = vmatpush1.msra.mxu0 0.0
    %530 = vmatprep.subr.mxu0 0.0
    %531 = vmatpush1.msra.mxu0 0.0
    %532 = vmatprep.subr.mxu0 0.0
    %533 = vmatpush1.msra.mxu0 0.0
    %534 = vmatprep.subr.mxu0 0.0
    %535 = vmatpush1.msra.mxu0 0.0
    %536 = vmatprep.subr.mxu0 0.0
    %537 = vmatpush1.msra.mxu0 0.0
    %538 = vmatprep.subr.mxu0 0.0
    %539 = vmatpush1.msra.mxu0 0.0
    %540 = vmatprep.subr.mxu0 0.0
    %541 = vmatpush1.msra.mxu0 0.0
    %542 = vmatprep.mubr.f32.mxu0 0.0
    %543 = vmatmul.mubr.f32.gmra.mrb[0].mxu0 %v476
    %v544 = vpop.f32.mrb[0].mxu0
    %v545 = vadd.f32 %v472, %v544
    %v546 = vpop.f32.mrb[0].mxu0
    %v547 = vadd.f32 %v472, %v546
    %548 = vdwg.mxu0
    %v549 = vxor.u32 %v545, 2147483648
    %v550 = vxor.u32 %v547, 2147483648
    %v551 = vmul.f32 %v549, 1.442695
    %v552 = vpow.pop %v551
    %v553 = vmul.f32 %v550, 1.442695
    %v554 = vpow.pop %v553
    %v555 = vadd.f32 %v552, 1.0
    %v556 = vadd.f32 %v554, 1.0
    %v557 = vrcp.pop %v555
    %v558 = vmul.f32 1.0, %v557
    %v559 = vrcp.pop %v556
    %v560 = vmul.f32 1.0, %v559
    %v561 = vmul.f32 %v545, %v558
    %v562 = vmul.f32 %v547, %v560
    %s563 = scalar_lea.vmem [#allocation8], 80
    %v564 = vld [vmem:[%s563] sm:$0xff]
    %v565 = vld [vmem:[%s563 + $0x8] sm:$0xff]
    %v566 = vmul.f32 %v561, %v564
    %v567 = vmul.f32 %v562, %v565
    %569 = vrot.lane.b32.xlu0 %v562, 5
    %v570 = vpop.permute.xlu0 %569
    %573 = vrot.lane.b32.xlu0 %v561, 5
    %v574 = vpop.permute.xlu0 %573
    %vm575 = vcmask 39936
    %v576 = vsel %vm575, %v574, %v570
    %v579 = vsel %vm575, %v570, %v574
    %v580 = vld [vmem:[#allocation8] sm:$0xff]
    %v581 = vld [vmem:[#allocation8 + $0x8] sm:$0xff]
    %v582 = vmul.f32 %v579, %v580
    %v583 = vmul.f32 %v576, %v581
    %584 = vrot.lane.b32.xlu0 %v562, 4
    %v585 = vpop.permute.xlu0 %584
    %587 = vrot.lane.b32.xlu0 %v561, 4
    %v588 = vpop.permute.xlu0 %587
    %vm589 = vcmask 31744
    %v590 = vsel %vm589, %v588, %v585
    %v593 = vsel %vm589, %v585, %v588
    %s594 = scalar_lea.vmem [#allocation8], 16
    %v595 = vld [vmem:[%s594] sm:$0xff]
    %v596 = vld [vmem:[%s594 + $0x8] sm:$0xff]
    %v597 = vmul.f32 %v593, %v595
    %v598 = vmul.f32 %v590, %v596
    %599 = vrot.lane.b32.xlu0 %v562, 3
    %v600 = vpop.permute.xlu0 %599
    %602 = vrot.lane.b32.xlu0 %v561, 3
    %v603 = vpop.permute.xlu0 %602
    %v604 = vsel %vm133, %v603, %v600
    %v607 = vsel %vm133, %v600, %v603
    %s608 = scalar_lea.vmem [#allocation8], 32
    %v609 = vld [vmem:[%s608] sm:$0xff]
    %v610 = vld [vmem:[%s608 + $0x8] sm:$0xff]
    %v611 = vmul.f32 %v607, %v609
    %v612 = vmul.f32 %v604, %v610
    %613 = vrot.lane.b32.xlu0 %v562, 2
    %v614 = vpop.permute.xlu0 %613
    %616 = vrot.lane.b32.xlu0 %v561, 2
    %v617 = vpop.permute.xlu0 %616
    %v618 = vsel %vm157, %v617, %v614
    %v621 = vsel %vm157, %v614, %v617
    %s622 = scalar_lea.vmem [#allocation8], 48
    %v623 = vld [vmem:[%s622] sm:$0xff]
    %v624 = vld [vmem:[%s622 + $0x8] sm:$0xff]
    %v625 = vmul.f32 %v621, %v623
    %v626 = vmul.f32 %v618, %v624
    %627 = vrot.lane.b32.xlu0 %v562, 1
    %v628 = vpop.permute.xlu0 %627
    %630 = vrot.lane.b32.xlu0 %v561, 1
    %v631 = vpop.permute.xlu0 %630
    %v632 = vsel %vm182, %v631, %v628
    %v635 = vsel %vm182, %v628, %v631
    %s636 = scalar_lea.vmem [#allocation8], 64
    %v637 = vld [vmem:[%s636] sm:$0xff]
    %v638 = vld [vmem:[%s636 + $0x8] sm:$0xff]
    %v639 = vmul.f32 %v635, %v637
    %v640 = vmul.f32 %v632, %v638
    %641 = vrot.lane.b32.xlu0 %v561, 127
    %v642 = vpop.permute.xlu0 %641
    %643 = vrot.lane.b32.xlu0 %v562, 127
    %v644 = vpop.permute.xlu0 %643
    %v645 = vsel %vm206, %v642, %v644
    %v649 = vsel %vm206, %v644, %v642
    %s650 = scalar_lea.vmem [#allocation8], 96
    %v651 = vld [vmem:[%s650] sm:$0xff]
    %v652 = vld [vmem:[%s650 + $0x8] sm:$0xff]
    %v653 = vmul.f32 %v645, %v651
    %v654 = vmul.f32 %v649, %v652
    %655 = vrot.lane.b32.xlu0 %v561, 126
    %v656 = vpop.permute.xlu0 %655
    %657 = vrot.lane.b32.xlu0 %v562, 126
    %v658 = vpop.permute.xlu0 %657
    %v659 = vsel %vm231, %v656, %v658
    %v663 = vsel %vm231, %v658, %v656
    %s664 = scalar_lea.vmem [#allocation8], 112
    %v665 = vld [vmem:[%s664] sm:$0xff]
    %v666 = vld [vmem:[%s664 + $0x8] sm:$0xff]
    %v667 = vmul.f32 %v659, %v665
    %v668 = vmul.f32 %v663, %v666
    %669 = vrot.lane.b32.xlu0 %v561, 125
    %v670 = vpop.permute.xlu0 %669
    %671 = vrot.lane.b32.xlu0 %v562, 125
    %v672 = vpop.permute.xlu0 %671
    %v673 = vsel %vm256, %v670, %v672
    %v677 = vsel %vm256, %v672, %v670
    %s678 = scalar_lea.vmem [#allocation8], 128
    %v679 = vld [vmem:[%s678] sm:$0xff]
    %v680 = vld [vmem:[%s678 + $0x8] sm:$0xff]
    %v681 = vmul.f32 %v673, %v679
    %v682 = vmul.f32 %v677, %v680
    %683 = vrot.lane.b32.xlu0 %v561, 124
    %v684 = vpop.permute.xlu0 %683
    %685 = vrot.lane.b32.xlu0 %v562, 124
    %v686 = vpop.permute.xlu0 %685
    %vm687 = vcmask 1014784
    %v688 = vsel %vm687, %v684, %v686
    %v692 = vsel %vm687, %v686, %v684
    %s693 = scalar_lea.vmem [#allocation8], 144
    %v694 = vld [vmem:[%s693] sm:$0xff]
    %v695 = vld [vmem:[%s693 + $0x8] sm:$0xff]
    %v696 = vmul.f32 %v688, %v694
    %v697 = vmul.f32 %v692, %v695
    %698 = vrot.lane.b32.xlu0 %v561, 123
    %v699 = vpop.permute.xlu0 %698
    %700 = vrot.lane.b32.xlu0 %v562, 123
    %v701 = vpop.permute.xlu0 %700
    %vm702 = vcmask 1006592
    %v703 = vsel %vm702, %v699, %v701
    %v707 = vsel %vm702, %v701, %v699
    %s708 = scalar_lea.vmem [#allocation8], 160
    %v709 = vld [vmem:[%s708] sm:$0xff]
    %v710 = vld [vmem:[%s708 + $0x8] sm:$0xff]
    %v711 = vmul.f32 %v703, %v709
    %v712 = vmul.f32 %v707, %v710
    %v713 = vadd.f32 %v566, %v597
    %v714 = vadd.f32 %v567, %v598
    %v715 = vadd.f32 %v713, %v625
    %v716 = vadd.f32 %v714, %v626
    %v717 = vadd.f32 %v715, %v653
    %v718 = vadd.f32 %v716, %v654
    %v719 = vadd.f32 %v717, %v681
    %v720 = vadd.f32 %v718, %v682
    %v721 = vadd.f32 %v719, %v711
    %v722 = vadd.f32 %v720, %v712
    %v723 = vadd.f32 %v582, %v611
    %v724 = vadd.f32 %v583, %v612
    %v725 = vadd.f32 %v723, %v639
    %v726 = vadd.f32 %v724, %v640
    %v727 = vadd.f32 %v725, %v667
    %v728 = vadd.f32 %v726, %v668
    %v729 = vadd.f32 %v727, %v696
    %v730 = vadd.f32 %v728, %v697
    %v731 = vadd.f32 %v721, %v729
    %v732 = vadd.f32 %v722, %v730
    %s733 = scalar_lea.vmem [#allocation10], 80
    %v734 = vld [vmem:[%s733] sm:$0xff]
    %v735 = vld [vmem:[%s733 + $0x8] sm:$0xff]
    %v736 = vmul.f32 %v731, %v734
    %v737 = vmul.f32 %v732, %v735
    %739 = vrot.lane.b32.xlu0 %v732, 80
    %v740 = vpop.permute.xlu0 %739
    %743 = vrot.lane.b32.xlu0 %v731, 80
    %v744 = vpop.permute.xlu0 %743
    %v745 = vsel %vm434, %v744, %v740
    %v748 = vsel %vm434, %v740, %v744
    %v749 = vld [vmem:[#allocation10] sm:$0xff]
    %v750 = vld [vmem:[#allocation10 + $0x8] sm:$0xff]
    %v751 = vmul.f32 %v748, %v749
    %v752 = vmul.f32 %v745, %v750
    %753 = vrot.lane.b32.xlu0 %v732, 64
    %v754 = vpop.permute.xlu0 %753
    %756 = vrot.lane.b32.xlu0 %v731, 64
    %v757 = vpop.permute.xlu0 %756
    %vm758 = vcmask 523264
    %v759 = vsel %vm758, %v757, %v754
    %v762 = vsel %vm758, %v754, %v757
    %s763 = scalar_lea.vmem [#allocation10], 16
    %v764 = vld [vmem:[%s763] sm:$0xff]
    %v765 = vld [vmem:[%s763 + $0x8] sm:$0xff]
    %v766 = vmul.f32 %v762, %v764
    %v767 = vmul.f32 %v759, %v765
    %768 = vrot.lane.b32.xlu0 %v732, 48
    %v769 = vpop.permute.xlu0 %768
    %771 = vrot.lane.b32.xlu0 %v731, 48
    %v772 = vpop.permute.xlu0 %771
    %v773 = vsel %vm311, %v772, %v769
    %v776 = vsel %vm311, %v769, %v772
    %s777 = scalar_lea.vmem [#allocation10], 32
    %v778 = vld [vmem:[%s777] sm:$0xff]
    %v779 = vld [vmem:[%s777 + $0x8] sm:$0xff]
    %v780 = vmul.f32 %v776, %v778
    %v781 = vmul.f32 %v773, %v779
    %782 = vrot.lane.b32.xlu0 %v732, 32
    %v783 = vpop.permute.xlu0 %782
    %785 = vrot.lane.b32.xlu0 %v731, 32
    %v786 = vpop.permute.xlu0 %785
    %v787 = vsel %vm335, %v786, %v783
    %v790 = vsel %vm335, %v783, %v786
    %s791 = scalar_lea.vmem [#allocation10], 48
    %v792 = vld [vmem:[%s791] sm:$0xff]
    %v793 = vld [vmem:[%s791 + $0x8] sm:$0xff]
    %v794 = vmul.f32 %v790, %v792
    %v795 = vmul.f32 %v787, %v793
    %796 = vrot.lane.b32.xlu0 %v732, 16
    %v797 = vpop.permute.xlu0 %796
    %799 = vrot.lane.b32.xlu0 %v731, 16
    %v800 = vpop.permute.xlu0 %799
    %v801 = vsel %vm360, %v800, %v797
    %v804 = vsel %vm360, %v797, %v800
    %s805 = scalar_lea.vmem [#allocation10], 64
    %v806 = vld [vmem:[%s805] sm:$0xff]
    %v807 = vld [vmem:[%s805 + $0x8] sm:$0xff]
    %v808 = vmul.f32 %v804, %v806
    %v809 = vmul.f32 %v801, %v807
    %810 = vrot.lane.b32.xlu0 %v731, 112
    %v811 = vpop.permute.xlu0 %810
    %812 = vrot.lane.b32.xlu0 %v732, 112
    %v813 = vpop.permute.xlu0 %812
    %v814 = vsel %vm384, %v811, %v813
    %v818 = vsel %vm384, %v813, %v811
    %s819 = scalar_lea.vmem [#allocation10], 96
    %v820 = vld [vmem:[%s819] sm:$0xff]
    %v821 = vld [vmem:[%s819 + $0x8] sm:$0xff]
    %v822 = vmul.f32 %v814, %v820
    %v823 = vmul.f32 %v818, %v821
    %824 = vrot.lane.b32.xlu0 %v731, 96
    %v825 = vpop.permute.xlu0 %824
    %826 = vrot.lane.b32.xlu0 %v732, 96
    %v827 = vpop.permute.xlu0 %826
    %v828 = vsel %vm409, %v825, %v827
    %v832 = vsel %vm409, %v827, %v825
    %s833 = scalar_lea.vmem [#allocation10], 112
    %v834 = vld [vmem:[%s833] sm:$0xff]
    %v835 = vld [vmem:[%s833 + $0x8] sm:$0xff]
    %v836 = vmul.f32 %v828, %v834
    %v837 = vmul.f32 %v832, %v835
    %s838 = scalar_lea.vmem [#allocation10], 128
    %v839 = vld [vmem:[%s838] sm:$0xff]
    %v840 = vld [vmem:[%s838 + $0x8] sm:$0xff]
    %v841 = vmul.f32 %v745, %v839
    %v842 = vmul.f32 %v748, %v840
    %s843 = scalar_lea.vmem [#allocation10], 144
    %v844 = vld [vmem:[%s843] sm:$0xff]
    %v845 = vld [vmem:[%s843 + $0x8] sm:$0xff]
    %v846 = vmul.f32 %v759, %v844
    %v847 = vmul.f32 %v762, %v845
    %s848 = scalar_lea.vmem [#allocation10], 160
    %v849 = vld [vmem:[%s848] sm:$0xff]
    %v850 = vld [vmem:[%s848 + $0x8] sm:$0xff]
    %v851 = vmul.f32 %v773, %v849
    %v852 = vmul.f32 %v776, %v850
    %v853 = vadd.f32 %v736, %v766
    %v854 = vadd.f32 %v737, %v767
    %v855 = vadd.f32 %v853, %v794
    %v856 = vadd.f32 %v854, %v795
    %v857 = vadd.f32 %v855, %v822
    %v858 = vadd.f32 %v856, %v823
    %v859 = vadd.f32 %v857, %v841
    %v860 = vadd.f32 %v858, %v842
    %v861 = vadd.f32 %v859, %v851
    %v862 = vadd.f32 %v860, %v852
    %v863 = vadd.f32 %v751, %v780
    %v864 = vadd.f32 %v752, %v781
    %v865 = vadd.f32 %v863, %v808
    %v866 = vadd.f32 %v864, %v809
    %v867 = vadd.f32 %v865, %v836
    %v868 = vadd.f32 %v866, %v837
    %v869 = vadd.f32 %v867, %v846
    %v870 = vadd.f32 %v868, %v847
    %v871 = vadd.f32 %v861, %v869
    %v872 = vadd.f32 %v862, %v870
    %v873 = vld [vmem:[#allocation11] sm:$0xff]
    %v874 = vld [vmem:[%s8] sm:$0xff]
    %v875 = vld [vmem:[%s8 + $0x8] sm:$0xff]
    %v877 = vsel %vm474, %v873, 0
    %879 = vmatprep.subr.mxu0 %v872
    %880 = vmatpush1.msra.mxu0 %v871
    %881 = vmatprep.subr.mxu0 0.0
    %882 = vmatpush1.msra.mxu0 0.0
    %883 = vmatprep.subr.mxu0 0.0
    %884 = vmatpush1.msra.mxu0 0.0
    %885 = vmatprep.subr.mxu0 0.0
    %886 = vmatpush1.msra.mxu0 0.0
    %887 = vmatprep.subr.mxu0 0.0
    %888 = vmatpush1.msra.mxu0 0.0
    %889 = vmatprep.subr.mxu0 0.0
    %890 = vmatpush1.msra.mxu0 0.0
    %891 = vmatprep.subr.mxu0 0.0
    %892 = vmatpush1.msra.mxu0 0.0
    %893 = vmatprep.subr.mxu0 0.0
    %894 = vmatpush1.msra.mxu0 0.0
    %895 = vmatprep.subr.mxu0 0.0
    %896 = vmatpush1.msra.mxu0 0.0
    %897 = vmatprep.subr.mxu0 0.0
    %898 = vmatpush1.msra.mxu0 0.0
    %899 = vmatprep.subr.mxu0 0.0
    %900 = vmatpush1.msra.mxu0 0.0
    %901 = vmatprep.subr.mxu0 0.0
    %902 = vmatpush1.msra.mxu0 0.0
    %903 = vmatprep.subr.mxu0 0.0
    %904 = vmatpush1.msra.mxu0 0.0
    %905 = vmatprep.subr.mxu0 0.0
    %906 = vmatpush1.msra.mxu0 0.0
    %907 = vmatprep.subr.mxu0 0.0
    %908 = vmatpush1.msra.mxu0 0.0
    %909 = vmatprep.subr.mxu0 0.0
    %910 = vmatpush1.msra.mxu0 0.0
    %911 = vmatprep.subr.mxu0 0.0
    %912 = vmatpush1.msra.mxu0 0.0
    %913 = vmatprep.subr.mxu0 0.0
    %914 = vmatpush1.msra.mxu0 0.0
    %915 = vmatprep.subr.mxu0 0.0
    %916 = vmatpush1.msra.mxu0 0.0
    %917 = vmatprep.subr.mxu0 0.0
    %918 = vmatpush1.msra.mxu0 0.0
    %919 = vmatprep.subr.mxu0 0.0
    %920 = vmatpush1.msra.mxu0 0.0
    %921 = vmatprep.subr.mxu0 0.0
    %922 = vmatpush1.msra.mxu0 0.0
    %923 = vmatprep.subr.mxu0 0.0
    %924 = vmatpush1.msra.mxu0 0.0
    %925 = vmatprep.subr.mxu0 0.0
    %926 = vmatpush1.msra.mxu0 0.0
    %927 = vmatprep.subr.mxu0 0.0
    %928 = vmatpush1.msra.mxu0 0.0
    %929 = vmatprep.subr.mxu0 0.0
    %930 = vmatpush1.msra.mxu0 0.0
    %931 = vmatprep.subr.mxu0 0.0
    %932 = vmatpush1.msra.mxu0 0.0
    %933 = vmatprep.subr.mxu0 0.0
    %934 = vmatpush1.msra.mxu0 0.0
    %935 = vmatprep.subr.mxu0 0.0
    %936 = vmatpush1.msra.mxu0 0.0
    %937 = vmatprep.subr.mxu0 0.0
    %938 = vmatpush1.msra.mxu0 0.0
    %939 = vmatprep.subr.mxu0 0.0
    %940 = vmatpush1.msra.mxu0 0.0
    %941 = vmatprep.subr.mxu0 0.0
    %942 = vmatpush1.msra.mxu0 0.0
    %943 = vmatprep.mubr.f32.mxu0 0.0
    %944 = vmatmul.mubr.f32.gmra.mrb[0].mxu0 %v877
    %v945 = vpop.f32.mrb[0].mxu0
    %v946 = vadd.f32 %v874, %v945
    %v947 = vpop.f32.mrb[0].mxu0
    %v948 = vadd.f32 %v875, %v947
    %949 = vdwg.mxu0
    %v950 = vxor.u32 %v946, 2147483648
    %v951 = vxor.u32 %v948, 2147483648
    %v952 = vmul.f32 %v950, 1.442695
    %v953 = vpow.pop %v952
    %v954 = vmul.f32 %v951, 1.442695
    %v955 = vpow.pop %v954
    %v956 = vadd.f32 %v953, 1.0
    %v957 = vadd.f32 %v955, 1.0
    %v958 = vrcp.pop %v956
    %v959 = vmul.f32 1.0, %v958
    %v960 = vrcp.pop %v957
    %v961 = vmul.f32 1.0, %v960
    %v962 = vmul.f32 %v946, %v959
    %v963 = vmul.f32 %v948, %v961
    %v964 = vxor.u32 %v962, 2147483648
    %v965 = vxor.u32 %v963, 2147483648
    %v966 = vmul.f32 %v964, 1.442695
    %v967 = vpow.pop %v966
    %v968 = vmul.f32 %v965, 1.442695
    %v969 = vpow.pop %v968
    %v970 = vadd.f32 %v967, 1.0
    %v971 = vadd.f32 %v969, 1.0
    %v972 = vrcp.pop %v970
    %v973 = vmul.f32 1.0, %v972
    %v974 = vrcp.pop %v971
    %v975 = vmul.f32 1.0, %v974
    %v976 = vmul.f32 %v973, %v109
    %v977 = vmul.f32 %v975, %v110
    %978 = vst [vmem:[#allocation13] sm:$0xff] %v976
    %979 = vst [vmem:[#allocation13 + $0x8] sm:$0xff] %v977
    // Predicated region
    $region62: #{tpu_custom_call.1} parent=1 // pred_check
      _
    $region63: #{tpu_custom_call.1} parent=1 // pred_check_branch
      %981 = sbr.rel (0) target = $region65
    $region64: #{tpu_custom_call.1} parent=1 // pred_region
      %s983 = ssub.s32 256, 256
      %984 = vsyncadd [#allocation4], %s983
      %s986 = sshll.u32 [#allocation13], 4
      %s987 = int_to_ptr.vmem [resolvable:$true] %s986
      %989 = dma.vmem_to_hbm [thread:$0]  %s987, 256, %s9, [#allocation4]
    $region65: #{tpu_custom_call.1} parent=1 // pred_fallthru
      _
    // Predicated region
    $region66: #{tpu_custom_call.1} parent=1 // pred_check
      _
    $region67: #{tpu_custom_call.1} parent=1 // pred_check_branch
      %991 = sbr.rel (0) target = $region69
    $region68: #{tpu_custom_call.1} parent=1 // pred_region
      %992 = dma.done [#allocation4], 256
    $region69: #{tpu_custom_call.1} parent=1 // pred_fallthru
      _
    %993 = vsyncpa [#allocation3], 1
    %994 = vsyncpa [#allocation6], 1
    %995 = vsyncpa [#allocation9], 1
    %996 = vsyncpa [#allocation12], 1
    %997 = vsyncpa [#allocation4], 1

</llo_original>
